<compile_context>
chip_gen: v6e
topology: v6e:2x2x1
jax: 0.10.0
libtpu: 0.0.40
codegen_flags: <defaults>
</compile_context>

<pallas_src>
import functools

import jax
import jax.numpy as jnp
from jax.experimental import pallas as pl
from jax.experimental.pallas import tpu as pltpu


def _make_kernel(out_ch, mm_dtype):
  """Fused TemporalEmb forward over one row-block of tm nodes."""
  f32 = jnp.float32

  def kernel(adj_ref, h0b_ref, eb_ref, etile_ref,          # row-blocked inputs
             msg_ref, h0_ref, et_ref,                      # constant residents (acts)
             wself_ref, brgcn_ref, p0_ref, p1_ref,
             bpflat_ref, sel_ref, wa_ref, wb_ref, bh_ref,  # constant residents (weights)
             out_ref):
    h0_blk = h0b_ref[...]                                  # (tm, h)

    # ---- RGCN: self loop + all relation messages in one wide matmul, ReLU ----
    # TODO(synk): repo RGCN class body not in the provided source; a single self-loop
    # layer over num_rels*2 relations with dense row-normalized adjacency is assumed.
    agg = jnp.dot(adj_ref[...], msg_ref[...], preferred_element_type=f32)   # (tm, h)
    agg = agg + jnp.dot(h0_blk, wself_ref[...], preferred_element_type=f32)
    new_emb = jnp.maximum(agg + brgcn_ref[...], 0.0)                        # (tm, h)

    # ---- AGCRN: one GRU step with H0 = 0 (AVWGCN adaptive graph conv, K = 2) ----
    # supports rows for this block: softmax(relu(E_blk @ E^T), dim=1)
    s = jnp.dot(eb_ref[...], et_ref[...], preferred_element_type=f32)       # (tm, N)
    s = jnp.maximum(s, 0.0)
    s = jnp.exp(s - jnp.max(s, axis=1, keepdims=True))
    supports = s / jnp.sum(s, axis=1, keepdims=True)                        # exact div
    xg1 = jnp.dot(supports.astype(mm_dtype), h0_ref[...],
                  preferred_element_type=f32)                               # (tm, h)

    # Combined gate(R-half)+update pool contraction: one matmul per Chebyshev order
    # (k=0 identity support -> h0_blk, k=1 -> supports @ h0), no in-kernel concat.
    t = (jnp.dot(h0_blk, p0_ref[...], preferred_element_type=f32)
         + jnp.dot(xg1.astype(mm_dtype), p1_ref[...],
                   preferred_element_type=f32))                             # (tm, 2*oc*e)
    weighted = (t + bpflat_ref[...]) * etile_ref[...]                       # fold bias, E-weight
    cols = jnp.dot(weighted, sel_ref[...], preferred_element_type=f32)      # (tm, 2*oc)
    r_gate = jax.nn.sigmoid(cols[:, :out_ch])
    hc = jnp.tanh(cols[:, out_ch:])
    ada = (1.0 - r_gate) * hc                                               # H' = r*0 + (1-r)*hc

    # ---- fused ensemble + mu/sigma heads, lane-dense (128-padded) output ----
    out_ref[...] = (jnp.dot(new_emb.astype(mm_dtype), wa_ref[...],
                            preferred_element_type=f32)
                    + jnp.dot(ada.astype(mm_dtype), wb_ref[...],
                              preferred_element_type=f32)
                    + bh_ref[...])

  return kernel


def _prep_inputs(params, adj, h0, e_dim, out_ch, mm_dtype):
  """Host-side layout plumbing (cheap, folds under jit)."""
  h_dim = params['emb'].shape[1]
  num_rel, n, _ = adj.shape
  k_cheb = params['P_gate'].shape[0]
  f32 = jnp.float32

  # RGCN: hoist block-invariant relation messages out of the grid as (R*N, h);
  # flatten adjacency to (N, R*N) so aggregation is one wide matmul per block.
  msg = jnp.einsum('nj,rji->rni', h0, params['W_rel']).reshape(num_rel * n, h_dim)
  adj_cat = jnp.transpose(adj, (1, 0, 2)).reshape(n, num_rel * n)

  # AVWGCN pools: drop unused H rows (state = 0) and the dead Z half of the gate;
  # flatten to one (h, 2*oc*e) matmul per Chebyshev order.
  def flat(pool):                                   # (K, e, h, oc_eff) -> (K, h, oc_eff*e)
    return jnp.transpose(pool, (0, 2, 3, 1)).reshape(k_cheb, h_dim, -1)

  p_r = flat(params['P_gate'][:, :, :h_dim, out_ch:])      # r-gate half only
  p_u = flat(params['P_upd'][:, :, :h_dim, :])
  pcomb = jnp.concatenate([p_r, p_u], axis=2)              # (K, h, 2*oc*e)
  bp = jnp.concatenate([params['bp_gate'][:, out_ch:].T, params['bp_upd'].T],
                       axis=0)                             # (2*oc, e)
  bp_flat = bp.reshape(1, 2 * out_ch * e_dim).astype(f32)
  sel = (jnp.arange(2 * out_ch * e_dim)[:, None] // e_dim
         == jnp.arange(2 * out_ch)[None, :]).astype(f32)   # (2*oc*e, 2*oc) 0/1
  e_tile = jnp.tile(params['E'], (1, 2 * out_ch)).astype(f32)  # (N, 2*oc*e)

  # Ensemble Linear and mu/sigma heads collapsed; pad to a lane-dense 128-col output.
  w_head = jnp.concatenate([params['W_mu'], params['W_sigma']], axis=1)    # (h, 2h)
  b_head = jnp.concatenate([params['b_mu'], params['b_sigma']], axis=1)    # (1, 2h)
  wa = params['W_ens_a'] @ w_head                                          # (h, 2h)
  wb = params['W_ens_b'] @ w_head                                          # (oc, 2h)
  bh = params['b_ens'] @ w_head + b_head                                   # (1, 2h)
  out_cols = max(128, ((2 * h_dim + 127) // 128) * 128)
  pad = out_cols - 2 * h_dim
  wa = jnp.pad(wa, ((0, 0), (0, pad)))
  wb = jnp.pad(wb, ((0, 0), (0, pad)))
  bh = jnp.pad(bh, ((0, 0), (0, pad))).astype(f32)

  mm = lambda a: a.astype(mm_dtype)
  return dict(
      adj_cat=mm(adj_cat), h0=mm(h0), e=mm(params['E']), e_tile=e_tile,
      msg=mm(msg), et=mm(params['E'].T),
      w_self=mm(params['W_self']), b_rgcn=params['b_rgcn'].astype(f32),
      p0=mm(pcomb[0]), p1=mm(pcomb[1]), bp_flat=bp_flat, sel=sel,
      wa=mm(wa), wb=mm(wb), bh=bh, out_cols=out_cols)


def _choose_tile_and_vmem(n, h, e, oc, num_rel, out_cols, mm_bytes, tm):
  """Generation-aware row-tile and VMEM budget selection."""
  try:
    cap = int(pltpu.get_tpu_info().vmem_capacity_bytes)
  except Exception:
    cap = 128 << 20
  two_cores = cap <= (65 << 20)   # v7x: 64 MiB VMEM per TC, 2 TCs per chip
  budget = (cap - (12 << 20)) if two_cores else min(cap - (16 << 20), 100 << 20)
  budget = int(max(budget, 32 << 20))

  def need(t):  # rough per-core VMEM need (double-buffered blocks + residents + temps)
    blocked = ((t * num_rel * n + t * h + t * e) * mm_bytes
               + t * 2 * oc * e * 4 + t * out_cols * 4)
    resident = (((num_rel * n + n) * h + e * n + h * h + 2 * h * 2 * oc * e
                 + (h + oc) * out_cols) * mm_bytes
                + (h + 2 * oc * e * (1 + 2 * oc) + out_cols) * 4)
    temps = t * n * 4 * 3 + t * h * 4 * 4 + t * 2 * oc * e * 4 * 2
    return 2 * (blocked + resident) + temps + (4 << 20)

  if tm is None:
    cands = sorted({t for t in range(8, n + 1, 8) if n % t == 0} | {n})
    fit = [t for t in cands if need(t) <= budget]
    tm = max(fit) if fit else cands[0]
    if two_cores and tm > (n // 2) and (n // 2) in cands:
      tm = n // 2   # keep both v7x TensorCores busy
  return tm, budget


def temporal_emb_forward(x, adj, params, *, e_dim, out_ch, tm=None,
                         matmul_dtype=jnp.bfloat16):
  """x: (N,) int node ids; adj: (R, N, N) dense row-normalized relational adjacency."""
  h_dim = params['emb'].shape[1]
  num_rel, n, _ = adj.shape
  assert x.shape[0] == n and params['P_gate'].shape[0] == 2, \
      "kernel is specialized to Chebyshev K=2 and full-graph node ids"

  # Embedding lookup is glue (gather); everything else runs inside the Pallas kernel.
  h0 = jnp.take(params['emb'], x, axis=0).astype(jnp.float32)              # (N, h)
  prep = _prep_inputs(params, adj, h0, e_dim, out_ch, matmul_dtype)
  out_cols = prep['out_cols']

  tm, vmem_budget = _choose_tile_and_vmem(
      n, h_dim, e_dim, out_ch, num_rel, out_cols,
      jnp.dtype(matmul_dtype).itemsize, tm)
  assert n % tm == 0 and (tm == n or tm % 8 == 0), \
      "row tile must divide N and be sublane-aligned"

  row = lambda i: (i, 0)      # row-blocked
  full = lambda i: (0, 0)     # constant resident (2-D)

  ins = (prep['adj_cat'], prep['h0'], prep['e'], prep['e_tile'],
         prep['msg'], prep['h0'], prep['et'],
         prep['w_self'], prep['b_rgcn'], prep['p0'], prep['p1'],
         prep['bp_flat'], prep['sel'], prep['wa'], prep['wb'], prep['bh'])
  in_specs = [
      pl.BlockSpec((tm, num_rel * n), row),              # adjacency slab (blocked)
      pl.BlockSpec((tm, h_dim), row),                    # h0 rows of this block
      pl.BlockSpec((tm, e_dim), row),                    # E rows of this block
      pl.BlockSpec((tm, 2 * out_ch * e_dim), row),       # E tiled (readout weighting)
      pl.BlockSpec(prep['msg'].shape, full),             # hoisted relation messages
      pl.BlockSpec(prep['h0'].shape, full),              # full h0 (supports @ h0)
      pl.BlockSpec(prep['et'].shape, full),              # E^T
      pl.BlockSpec(prep['w_self'].shape, full),
      pl.BlockSpec(prep['b_rgcn'].shape, full),
      pl.BlockSpec(prep['p0'].shape, full),
      pl.BlockSpec(prep['p1'].shape, full),
      pl.BlockSpec(prep['bp_flat'].shape, full),
      pl.BlockSpec(prep['sel'].shape, full),
      pl.BlockSpec(prep['wa'].shape, full),
      pl.BlockSpec(prep['wb'].shape, full),
      pl.BlockSpec(prep['bh'].shape, full),
  ]

  out = pl.pallas_call(
      _make_kernel(out_ch, matmul_dtype),
      out_shape=jax.ShapeDtypeStruct((n, out_cols), jnp.float32),
      grid=(n // tm,),
      in_specs=in_specs,
      out_specs=pl.BlockSpec((tm, out_cols), row),
      compiler_params=pltpu.CompilerParams(
          dimension_semantics=("parallel",),
          vmem_limit_bytes=int(vmem_budget)),
  )(*ins)

  mu = out[:, :h_dim]
  sigma = out[:, h_dim:2 * h_dim]
  return mu, sigma


def init_params(key, num_nodes, h_dim, e_dim, out_ch, num_rel, k_cheb=2):
  """Deterministic synthetic parameters (shapes follow TemporalEmb.__init__)."""
  ks = jax.random.split(key, 12)

  def dense(k, fan_in, shape):
    return (jax.random.normal(k, shape, jnp.float32) /
            jnp.sqrt(jnp.float32(fan_in))).astype(jnp.float32)

  in_g = h_dim + out_ch  # AGCRN gate/update in_channels = h_dim + out_channels
  return dict(
      emb=dense(ks[0], 1.0, (num_nodes, h_dim)),                       # nn.Embedding
      W_rel=dense(ks[1], h_dim, (num_rel, h_dim, h_dim)),              # RGCN relation weights
      W_self=dense(ks[2], h_dim, (h_dim, h_dim)),                      # RGCN self-loop weight
      b_rgcn=jnp.zeros((1, h_dim), jnp.float32),
      E=dense(ks[3], e_dim, (num_nodes, e_dim)),                       # AGCRN node embeddings (self.e)
      P_gate=dense(ks[4], in_g, (k_cheb, e_dim, in_g, 2 * out_ch)),    # AVWGCN gate weights_pool
      bp_gate=dense(ks[5], e_dim, (e_dim, 2 * out_ch)),
      P_upd=dense(ks[6], in_g, (k_cheb, e_dim, in_g, out_ch)),         # AVWGCN update weights_pool
      bp_upd=dense(ks[7], e_dim, (e_dim, out_ch)),
      W_ens_a=dense(ks[8], h_dim + out_ch, (h_dim, h_dim)),            # ensemble Linear (split)
      W_ens_b=dense(ks[9], h_dim + out_ch, (out_ch, h_dim)),
      b_ens=jnp.zeros((1, h_dim), jnp.float32),
      W_mu=dense(ks[10], h_dim, (h_dim, h_dim)),                       # mu_embedding Linear
      b_mu=jnp.zeros((1, h_dim), jnp.float32),
      W_sigma=dense(ks[11], h_dim, (h_dim, h_dim)),                    # sigma_embedding Linear
      b_sigma=jnp.zeros((1, h_dim), jnp.float32),
  )


if __name__ == "__main__":
  NUM_NODES, H_DIM, E_DIM, OUT_CH, NUM_RELS = 64, 32, 10, 2, 1
  R = NUM_RELS * 2

  key = jax.random.PRNGKey(0)
  kp, ka = jax.random.split(key)
  params = init_params(kp, NUM_NODES, H_DIM, E_DIM, OUT_CH, R)

  # Dense, row-normalized relational adjacency standing in for the graph `g`.
  adj = (jax.random.uniform(ka, (R, NUM_NODES, NUM_NODES)) < 0.1).astype(jnp.float32)
  deg = jnp.maximum(adj.sum(axis=-1, keepdims=True), 1.0)
  adj = adj / deg

  x = jnp.arange(NUM_NODES, dtype=jnp.int32)

  fwd = jax.jit(functools.partial(temporal_emb_forward, e_dim=E_DIM, out_ch=OUT_CH))
  mu, sigma = fwd(x, adj, params)
  jax.block_until_ready((mu, sigma))

  assert mu.shape == (NUM_NODES, H_DIM) and sigma.shape == (NUM_NODES, H_DIM)
  assert mu.dtype == jnp.float32 and sigma.dtype == jnp.float32
  assert bool(jnp.all(jnp.isfinite(mu))) and bool(jnp.all(jnp.isfinite(sigma)))
  print("KERNEL_OK")
</pallas_src>

<mosaic_0001>
module attributes {stable_mosaic.version = 11 : i64} {
  func.func @kernel(%arg0: i32, %arg1: memref<64x128xbf16, #tpu.memory_space<vmem>>, %arg2: memref<64x32xbf16, #tpu.memory_space<vmem>>, %arg3: memref<64x10xbf16, #tpu.memory_space<vmem>>, %arg4: memref<64x40xf32, #tpu.memory_space<vmem>>, %arg5: memref<128x32xbf16, #tpu.memory_space<vmem>>, %arg6: memref<64x32xbf16, #tpu.memory_space<vmem>>, %arg7: memref<10x64xbf16, #tpu.memory_space<vmem>>, %arg8: memref<32x32xbf16, #tpu.memory_space<vmem>>, %arg9: memref<1x32xf32, #tpu.memory_space<vmem>>, %arg10: memref<32x40xbf16, #tpu.memory_space<vmem>>, %arg11: memref<32x40xbf16, #tpu.memory_space<vmem>>, %arg12: memref<1x40xf32, #tpu.memory_space<vmem>>, %arg13: memref<40x4xf32, #tpu.memory_space<vmem>>, %arg14: memref<32x128xbf16, #tpu.memory_space<vmem>>, %arg15: memref<2x128xbf16, #tpu.memory_space<vmem>>, %arg16: memref<1x128xf32, #tpu.memory_space<vmem>>, %arg17: memref<64x128xf32, #tpu.memory_space<vmem>>) attributes {dimension_semantics = [#tpu.dimension_semantics<parallel>], iteration_bounds = array<i64: 1>, scalar_prefetch = 0 : i64, scratch_operands = 0 : i64, tpu.core_type = #tpu.core_type<tc>, window_params = [{transform_indices = @transform_0, window_bounds = array<i64: 64, 128>}, {transform_indices = @transform_1, window_bounds = array<i64: 64, 32>}, {transform_indices = @transform_2, window_bounds = array<i64: 64, 10>}, {transform_indices = @transform_3, window_bounds = array<i64: 64, 40>}, {pipeline_mode = #tpu.pipeline_mode<synchronous>, transform_indices = @transform_4, window_bounds = array<i64: 128, 32>}, {pipeline_mode = #tpu.pipeline_mode<synchronous>, transform_indices = @transform_5, window_bounds = array<i64: 64, 32>}, {pipeline_mode = #tpu.pipeline_mode<synchronous>, transform_indices = @transform_6, window_bounds = array<i64: 10, 64>}, {pipeline_mode = #tpu.pipeline_mode<synchronous>, transform_indices = @transform_7, window_bounds = array<i64: 32, 32>}, {pipeline_mode = #tpu.pipeline_mode<synchronous>, transform_indices = @transform_8, window_bounds = array<i64: 1, 32>}, {pipeline_mode = #tpu.pipeline_mode<synchronous>, transform_indices = @transform_9, window_bounds = array<i64: 32, 40>}, {pipeline_mode = #tpu.pipeline_mode<synchronous>, transform_indices = @transform_10, window_bounds = array<i64: 32, 40>}, {pipeline_mode = #tpu.pipeline_mode<synchronous>, transform_indices = @transform_11, window_bounds = array<i64: 1, 40>}, {pipeline_mode = #tpu.pipeline_mode<synchronous>, transform_indices = @transform_12, window_bounds = array<i64: 40, 4>}, {pipeline_mode = #tpu.pipeline_mode<synchronous>, transform_indices = @transform_13, window_bounds = array<i64: 32, 128>}, {pipeline_mode = #tpu.pipeline_mode<synchronous>, transform_indices = @transform_14, window_bounds = array<i64: 2, 128>}, {pipeline_mode = #tpu.pipeline_mode<synchronous>, transform_indices = @transform_15, window_bounds = array<i64: 1, 128>}, {transform_indices = @transform_16, window_bounds = array<i64: 64, 128>}]} {
    %c0 = arith.constant 0 : index
    %c0_0 = arith.constant 0 : index
    %0 = vector.load %arg2[%c0, %c0_0] : memref<64x32xbf16, #tpu.memory_space<vmem>>, vector<64x32xbf16>
    %c0_1 = arith.constant 0 : index
    %c0_2 = arith.constant 0 : index
    %1 = vector.load %arg1[%c0_1, %c0_2] : memref<64x128xbf16, #tpu.memory_space<vmem>>, vector<64x128xbf16>
    %c0_3 = arith.constant 0 : index
    %c0_4 = arith.constant 0 : index
    %2 = vector.load %arg5[%c0_3, %c0_4] : memref<128x32xbf16, #tpu.memory_space<vmem>>, vector<128x32xbf16>
    %cst = arith.constant dense<0.000000e+00> : vector<64x32xf32>
    %3 = tpu.matmul %1, %2, %cst {dimension_numbers = #tpu.dot_dimension_numbers<[1], [0], [0], [1], [0, 0, 1, 1], [], []>} : vector<64x128xbf16>, vector<128x32xbf16>, vector<64x32xf32> -> vector<64x32xf32>
    %c0_5 = arith.constant 0 : index
    %c0_6 = arith.constant 0 : index
    %4 = vector.load %arg8[%c0_5, %c0_6] : memref<32x32xbf16, #tpu.memory_space<vmem>>, vector<32x32xbf16>
    %cst_7 = arith.constant dense<0.000000e+00> : vector<64x32xf32>
    %5 = tpu.matmul %0, %4, %cst_7 {dimension_numbers = #tpu.dot_dimension_numbers<[1], [0], [0], [1], [0, 0, 1, 1], [], []>} : vector<64x32xbf16>, vector<32x32xbf16>, vector<64x32xf32> -> vector<64x32xf32>
    %6 = arith.addf %3, %5 : vector<64x32xf32>
    %c0_8 = arith.constant 0 : index
    %c0_9 = arith.constant 0 : index
    %7 = vector.load %arg9[%c0_8, %c0_9] : memref<1x32xf32, #tpu.memory_space<vmem>>, vector<1x32xf32>
    %8 = vector.broadcast %7 : vector<1x32xf32> to vector<64x32xf32>
    %9 = arith.addf %6, %8 : vector<64x32xf32>
    %cst_10 = arith.constant 0.000000e+00 : f32
    %10 = vector.broadcast %cst_10 : f32 to vector<64x32xf32>
    %11 = arith.maximumf %9, %10 : vector<64x32xf32>
    %c0_11 = arith.constant 0 : index
    %c0_12 = arith.constant 0 : index
    %12 = vector.load %arg3[%c0_11, %c0_12] : memref<64x10xbf16, #tpu.memory_space<vmem>>, vector<64x10xbf16>
    %c0_13 = arith.constant 0 : index
    %c0_14 = arith.constant 0 : index
    %13 = vector.load %arg7[%c0_13, %c0_14] : memref<10x64xbf16, #tpu.memory_space<vmem>>, vector<10x64xbf16>
    %cst_15 = arith.constant dense<0.000000e+00> : vector<64x64xf32>
    %14 = tpu.matmul %12, %13, %cst_15 {dimension_numbers = #tpu.dot_dimension_numbers<[1], [0], [0], [1], [0, 0, 1, 1], [], []>} : vector<64x10xbf16>, vector<10x64xbf16>, vector<64x64xf32> -> vector<64x64xf32>
    %cst_16 = arith.constant 0.000000e+00 : f32
    %15 = vector.broadcast %cst_16 : f32 to vector<64x64xf32>
    %16 = arith.maximumf %14, %15 : vector<64x64xf32>
    %cst_17 = arith.constant dense<0xFF800000> : vector<64xf32>
    %17 = vector.multi_reduction <maximumf>, %16, %cst_17 [1] : vector<64x64xf32> to vector<64xf32>
    %18 = vector.shape_cast %17 : vector<64xf32> to vector<64x1xf32>
    %19 = vector.broadcast %18 : vector<64x1xf32> to vector<64x64xf32>
    %20 = arith.subf %16, %19 : vector<64x64xf32>
    %21 = math.exp %20 : vector<64x64xf32>
    %cst_18 = arith.constant dense<0.000000e+00> : vector<64xf32>
    %22 = vector.multi_reduction <add>, %21, %cst_18 [1] : vector<64x64xf32> to vector<64xf32>
    %23 = vector.shape_cast %22 : vector<64xf32> to vector<64x1xf32>
    %24 = vector.broadcast %23 : vector<64x1xf32> to vector<64x64xf32>
    %25 = arith.divf %21, %24 : vector<64x64xf32>
    %26 = arith.truncf %25 : vector<64x64xf32> to vector<64x64xbf16>
    %c0_19 = arith.constant 0 : index
    %c0_20 = arith.constant 0 : index
    %27 = vector.load %arg6[%c0_19, %c0_20] : memref<64x32xbf16, #tpu.memory_space<vmem>>, vector<64x32xbf16>
    %cst_21 = arith.constant dense<0.000000e+00> : vector<64x32xf32>
    %28 = tpu.matmul %26, %27, %cst_21 {dimension_numbers = #tpu.dot_dimension_numbers<[1], [0], [0], [1], [0, 0, 1, 1], [], []>} : vector<64x64xbf16>, vector<64x32xbf16>, vector<64x32xf32> -> vector<64x32xf32>
    %c0_22 = arith.constant 0 : index
    %c0_23 = arith.constant 0 : index
    %29 = vector.load %arg10[%c0_22, %c0_23] : memref<32x40xbf16, #tpu.memory_space<vmem>>, vector<32x40xbf16>
    %cst_24 = arith.constant dense<0.000000e+00> : vector<64x40xf32>
    %30 = tpu.matmul %0, %29, %cst_24 {dimension_numbers = #tpu.dot_dimension_numbers<[1], [0], [0], [1], [0, 0, 1, 1], [], []>} : vector<64x32xbf16>, vector<32x40xbf16>, vector<64x40xf32> -> vector<64x40xf32>
    %31 = arith.truncf %28 : vector<64x32xf32> to vector<64x32xbf16>
    %c0_25 = arith.constant 0 : index
    %c0_26 = arith.constant 0 : index
    %32 = vector.load %arg11[%c0_25, %c0_26] : memref<32x40xbf16, #tpu.memory_space<vmem>>, vector<32x40xbf16>
    %cst_27 = arith.constant dense<0.000000e+00> : vector<64x40xf32>
    %33 = tpu.matmul %31, %32, %cst_27 {dimension_numbers = #tpu.dot_dimension_numbers<[1], [0], [0], [1], [0, 0, 1, 1], [], []>} : vector<64x32xbf16>, vector<32x40xbf16>, vector<64x40xf32> -> vector<64x40xf32>
    %34 = arith.addf %30, %33 : vector<64x40xf32>
    %c0_28 = arith.constant 0 : index
    %c0_29 = arith.constant 0 : index
    %35 = vector.load %arg12[%c0_28, %c0_29] : memref<1x40xf32, #tpu.memory_space<vmem>>, vector<1x40xf32>
    %36 = vector.broadcast %35 : vector<1x40xf32> to vector<64x40xf32>
    %37 = arith.addf %34, %36 : vector<64x40xf32>
    %c0_30 = arith.constant 0 : index
    %c0_31 = arith.constant 0 : index
    %38 = vector.load %arg4[%c0_30, %c0_31] : memref<64x40xf32, #tpu.memory_space<vmem>>, vector<64x40xf32>
    %39 = arith.mulf %37, %38 : vector<64x40xf32>
    %c0_32 = arith.constant 0 : index
    %c0_33 = arith.constant 0 : index
    %40 = vector.load %arg13[%c0_32, %c0_33] : memref<40x4xf32, #tpu.memory_space<vmem>>, vector<40x4xf32>
    %cst_34 = arith.constant dense<0.000000e+00> : vector<64x4xf32>
    %41 = tpu.matmul %39, %40, %cst_34 {dimension_numbers = #tpu.dot_dimension_numbers<[1], [0], [0], [1], [0, 0, 1, 1], [], []>} : vector<64x40xf32>, vector<40x4xf32>, vector<64x4xf32> -> vector<64x4xf32>
    %42 = vector.extract_strided_slice %41 {offsets = [0, 0], sizes = [64, 2], strides = [1, 1]} : vector<64x4xf32> to vector<64x2xf32>
    %43 = arith.negf %42 : vector<64x2xf32>
    %44 = math.exp %43 : vector<64x2xf32>
    %cst_35 = arith.constant 1.000000e+00 : f32
    %45 = vector.broadcast %cst_35 : f32 to vector<64x2xf32>
    %46 = arith.addf %45, %44 : vector<64x2xf32>
    %47 = arith.divf %45, %46 : vector<64x2xf32>
    %48 = vector.extract_strided_slice %41 {offsets = [0, 2], sizes = [64, 2], strides = [1, 1]} : vector<64x4xf32> to vector<64x2xf32>
    %49 = math.tanh %48 : vector<64x2xf32>
    %cst_36 = arith.constant 1.000000e+00 : f32
    %50 = vector.broadcast %cst_36 : f32 to vector<64x2xf32>
    %51 = arith.subf %50, %47 : vector<64x2xf32>
    %52 = arith.mulf %51, %49 : vector<64x2xf32>
    %53 = arith.truncf %11 : vector<64x32xf32> to vector<64x32xbf16>
    %c0_37 = arith.constant 0 : index
    %c0_38 = arith.constant 0 : index
    %54 = vector.load %arg14[%c0_37, %c0_38] : memref<32x128xbf16, #tpu.memory_space<vmem>>, vector<32x128xbf16>
    %cst_39 = arith.constant dense<0.000000e+00> : vector<64x128xf32>
    %55 = tpu.matmul %53, %54, %cst_39 {dimension_numbers = #tpu.dot_dimension_numbers<[1], [0], [0], [1], [0, 0, 1, 1], [], []>} : vector<64x32xbf16>, vector<32x128xbf16>, vector<64x128xf32> -> vector<64x128xf32>
    %56 = arith.truncf %52 : vector<64x2xf32> to vector<64x2xbf16>
    %c0_40 = arith.constant 0 : index
    %c0_41 = arith.constant 0 : index
    %57 = vector.load %arg15[%c0_40, %c0_41] : memref<2x128xbf16, #tpu.memory_space<vmem>>, vector<2x128xbf16>
    %cst_42 = arith.constant dense<0.000000e+00> : vector<64x128xf32>
    %58 = tpu.matmul %56, %57, %cst_42 {dimension_numbers = #tpu.dot_dimension_numbers<[1], [0], [0], [1], [0, 0, 1, 1], [], []>} : vector<64x2xbf16>, vector<2x128xbf16>, vector<64x128xf32> -> vector<64x128xf32>
    %59 = arith.addf %55, %58 : vector<64x128xf32>
    %c0_43 = arith.constant 0 : index
    %c0_44 = arith.constant 0 : index
    %60 = vector.load %arg16[%c0_43, %c0_44] : memref<1x128xf32, #tpu.memory_space<vmem>>, vector<1x128xf32>
    %61 = vector.broadcast %60 : vector<1x128xf32> to vector<64x128xf32>
    %62 = arith.addf %59, %61 : vector<64x128xf32>
    %c0_45 = arith.constant 0 : index
    %c0_46 = arith.constant 0 : index
    %63 = vector.load %arg17[%c0_45, %c0_46] : memref<64x128xf32, #tpu.memory_space<vmem>>, vector<64x128xf32>
    tpu.vector_store %arg17[%c0_45, %c0_46], %62 {strides = array<i32>} : memref<64x128xf32, #tpu.memory_space<vmem>>, vector<64x128xf32>,
    return
  }
  func.func @transform_0(%arg0: i32) -> (i32, i32) {
    %c0_i32 = arith.constant 0 : i32
    %c0_i32_0 = arith.constant 0 : i32
    return %arg0, %c0_i32 : i32, i32
  }
  func.func @transform_1(%arg0: i32) -> (i32, i32) {
    %c0_i32 = arith.constant 0 : i32
    %c0_i32_0 = arith.constant 0 : i32
    return %arg0, %c0_i32 : i32, i32
  }
  func.func @transform_2(%arg0: i32) -> (i32, i32) {
    %c0_i32 = arith.constant 0 : i32
    %c0_i32_0 = arith.constant 0 : i32
    return %arg0, %c0_i32 : i32, i32
  }
  func.func @transform_3(%arg0: i32) -> (i32, i32) {
    %c0_i32 = arith.constant 0 : i32
    %c0_i32_0 = arith.constant 0 : i32
    return %arg0, %c0_i32 : i32, i32
  }
  func.func @transform_4(%arg0: i32) -> (i32, i32) {
    %c0_i32 = arith.constant 0 : i32
    %c0_i32_0 = arith.constant 0 : i32
    %c0_i32_1 = arith.constant 0 : i32
    return %c0_i32, %c0_i32_0 : i32, i32
  }
  func.func @transform_5(%arg0: i32) -> (i32, i32) {
    %c0_i32 = arith.constant 0 : i32
    %c0_i32_0 = arith.constant 0 : i32
    %c0_i32_1 = arith.constant 0 : i32
    return %c0_i32, %c0_i32_0 : i32, i32
  }
  func.func @transform_6(%arg0: i32) -> (i32, i32) {
    %c0_i32 = arith.constant 0 : i32
    %c0_i32_0 = arith.constant 0 : i32
    %c0_i32_1 = arith.constant 0 : i32
    return %c0_i32, %c0_i32_0 : i32, i32
  }
  func.func @transform_7(%arg0: i32) -> (i32, i32) {
    %c0_i32 = arith.constant 0 : i32
    %c0_i32_0 = arith.constant 0 : i32
    %c0_i32_1 = arith.constant 0 : i32
    return %c0_i32, %c0_i32_0 : i32, i32
  }
  func.func @transform_8(%arg0: i32) -> (i32, i32) {
    %c0_i32 = arith.constant 0 : i32
    %c0_i32_0 = arith.constant 0 : i32
    %c0_i32_1 = arith.constant 0 : i32
    return %c0_i32, %c0_i32_0 : i32, i32
  }
  func.func @transform_9(%arg0: i32) -> (i32, i32) {
    %c0_i32 = arith.constant 0 : i32
    %c0_i32_0 = arith.constant 0 : i32
    %c0_i32_1 = arith.constant 0 : i32
    return %c0_i32, %c0_i32_0 : i32, i32
  }
  func.func @transform_10(%arg0: i32) -> (i32, i32) {
    %c0_i32 = arith.constant 0 : i32
    %c0_i32_0 = arith.constant 0 : i32
    %c0_i32_1 = arith.constant 0 : i32
    return %c0_i32, %c0_i32_0 : i32, i32
  }
  func.func @transform_11(%arg0: i32) -> (i32, i32) {
    %c0_i32 = arith.constant 0 : i32
    %c0_i32_0 = arith.constant 0 : i32
    %c0_i32_1 = arith.constant 0 : i32
    return %c0_i32, %c0_i32_0 : i32, i32
  }
  func.func @transform_12(%arg0: i32) -> (i32, i32) {
    %c0_i32 = arith.constant 0 : i32
    %c0_i32_0 = arith.constant 0 : i32
    %c0_i32_1 = arith.constant 0 : i32
    return %c0_i32, %c0_i32_0 : i32, i32
  }
  func.func @transform_13(%arg0: i32) -> (i32, i32) {
    %c0_i32 = arith.constant 0 : i32
    %c0_i32_0 = arith.constant 0 : i32
    %c0_i32_1 = arith.constant 0 : i32
    return %c0_i32, %c0_i32_0 : i32, i32
  }
  func.func @transform_14(%arg0: i32) -> (i32, i32) {
    %c0_i32 = arith.constant 0 : i32
    %c0_i32_0 = arith.constant 0 : i32
    %c0_i32_1 = arith.constant 0 : i32
    return %c0_i32, %c0_i32_0 : i32, i32
  }
  func.func @transform_15(%arg0: i32) -> (i32, i32) {
    %c0_i32 = arith.constant 0 : i32
    %c0_i32_0 = arith.constant 0 : i32
    %c0_i32_1 = arith.constant 0 : i32
    return %c0_i32, %c0_i32_0 : i32, i32
  }
  func.func @transform_16(%arg0: i32) -> (i32, i32) {
    %c0_i32 = arith.constant 0 : i32
    %c0_i32_0 = arith.constant 0 : i32
    return %arg0, %c0_i32 : i32, i32
  }
}

</mosaic_0001>

<llo_original>
// kernel: tile.9
$region0: #{tile.9}
  %s0 = inlined_call_operand.vmem [shape: f32[64,4,10], index: 0, kind: input, shape index: {}]
  %s1 = inlined_call_operand.vmem [shape: f32[64,40], index: 1, kind: output, shape index: {}]
  %v2 = vld [vmem:[%s0] sm:$0xff]
  %vm3 = vcmask 523264
  %4 = vst.msk [vmem:[%s1] sm:$0xff] %vm3, %v2
  %s5 = scalar_lea.vmem %s0, 8
  %v6 = vld [vmem:[%s5] sm:$0x3]
  %vm7 = vcmask 523264
  %s8 = scalar_lea.vmem %s1, 8
  %9 = vst.msk [vmem:[%s8] sm:$0x3] %vm7, %v6
  %s10 = scalar_lea.vmem %s0, 16
  %v11 = vld [vmem:[%s10] sm:$0xff]
  %vm12 = vcmask 523264
  %s13 = scalar_lea.vmem %s1, 10
  %14 = vst.msk [vmem:[%s13] sm:$0xff] %vm12, %v11
  %s15 = scalar_lea.vmem %s0, 24
  %v16 = vld [vmem:[%s15] sm:$0x3]
  %vm17 = vcmask 523264
  %s18 = scalar_lea.vmem %s1, 18
  %19 = vst.msk [vmem:[%s18] sm:$0x3] %vm17, %v16
  %s20 = scalar_lea.vmem %s0, 32
  %v21 = vld [vmem:[%s20] sm:$0xff]
  %vm22 = vcmask 523264
  %s23 = scalar_lea.vmem %s1, 20
  %24 = vst.msk [vmem:[%s23] sm:$0xff] %vm22, %v21
  %s25 = scalar_lea.vmem %s0, 40
  %v26 = vld [vmem:[%s25] sm:$0x3]
  %vm27 = vcmask 523264
  %s28 = scalar_lea.vmem %s1, 28
  %29 = vst.msk [vmem:[%s28] sm:$0x3] %vm27, %v26
  %s30 = scalar_lea.vmem %s0, 48
  %v31 = vld [vmem:[%s30] sm:$0xff]
  %vm32 = vcmask 523264
  %s33 = scalar_lea.vmem %s1, 30
  %34 = vst.msk [vmem:[%s33] sm:$0xff] %vm32, %v31
  %s35 = scalar_lea.vmem %s0, 56
  %v36 = vld [vmem:[%s35] sm:$0x3]
  %vm37 = vcmask 523264
  %s38 = scalar_lea.vmem %s1, 38
  %39 = vst.msk [vmem:[%s38] sm:$0x3] %vm37, %v36

// kernel: temporal_emb_forward.1
$region0: #{temporal_emb_forward.1}
  #allocation0 [shape = 'u32[]', space=smem, size = 0x4, offset = 0x4, fixed_abs, tag = 'smem constant byte address 0x4 - core index']
  #allocation1 [shape = 'u32[144,128]{1,0:T(1,128)}', space=vmem, size = 0x12000, scoped, tag = 'internal scratch']
  %s0 = inlined_call_operand.vmem [shape: bf16[64,128], index: 0, kind: input, shape index: {}]
  %s1 = inlined_call_operand.vmem [shape: bf16[64,32], index: 1, kind: input, shape index: {}, may-alias: {1,5}]
  %s2 = inlined_call_operand.vmem [shape: bf16[64,10], index: 2, kind: input, shape index: {}]
  %s3 = inlined_call_operand.vmem [shape: f32[64,40], index: 3, kind: input, shape index: {}]
  %s4 = inlined_call_operand.vmem [shape: bf16[128,32], index: 4, kind: input, shape index: {}]
  %s5 = inlined_call_operand.vmem [shape: bf16[64,32], index: 5, kind: input, shape index: {}, may-alias: {1,5}]
  %s6 = inlined_call_operand.vmem [shape: bf16[10,64], index: 6, kind: input, shape index: {}]
  %s7 = inlined_call_operand.vmem [shape: bf16[32,32], index: 7, kind: input, shape index: {}]
  %s8 = inlined_call_operand.vmem [shape: f32[1,32], index: 8, kind: input, shape index: {}]
  %s9 = inlined_call_operand.vmem [shape: bf16[32,40], index: 9, kind: input, shape index: {}]
  %s10 = inlined_call_operand.vmem [shape: bf16[32,40], index: 10, kind: input, shape index: {}]
  %s11 = inlined_call_operand.vmem [shape: f32[1,40], index: 11, kind: input, shape index: {}]
  %s12 = inlined_call_operand.vmem [shape: f32[40,4], index: 12, kind: input, shape index: {}]
  %s13 = inlined_call_operand.vmem [shape: bf16[32,128], index: 13, kind: input, shape index: {}]
  %s14 = inlined_call_operand.vmem [shape: bf16[2,128], index: 14, kind: input, shape index: {}]
  %s15 = inlined_call_operand.vmem [shape: f32[1,128], index: 15, kind: input, shape index: {}]
  %s16 = inlined_call_operand.vmem [shape: f32[64,128], index: 16, kind: output, shape index: {}]
  %s17 = sld [smem:[#allocation0]]
  $region74: #{temporal_emb_forward.1} parent=0
    _
  %s19 = ssub.s32 1, %s17
  %s20 = scalar_select 0, %s19, %s17
  // Predicated region
  $region2: #{temporal_emb_forward.1} parent=0 // pred_check
    _
  $region3: #{temporal_emb_forward.1} parent=0 // pred_check_branch
    %22 = sbr.rel (0) target = $region5
  $region4: #{temporal_emb_forward.1} parent=0 // pred_region
    _
  $region5: #{temporal_emb_forward.1} parent=0 // pred_fallthru
    _
  // Predicated region
  $region6: #{temporal_emb_forward.1} parent=0 // pred_check
    _
  $region7: #{temporal_emb_forward.1} parent=0 // pred_check_branch
    %24 = sbr.rel (0) target = $region9
  $region8: #{temporal_emb_forward.1} parent=0 // pred_region
    _
  $region9: #{temporal_emb_forward.1} parent=0 // pred_fallthru
    _
  // Predicated region
  $region10: #{temporal_emb_forward.1} parent=0 // pred_check
    _
  $region11: #{temporal_emb_forward.1} parent=0 // pred_check_branch
    %26 = sbr.rel (0) target = $region13
  $region12: #{temporal_emb_forward.1} parent=0 // pred_region
    _
  $region13: #{temporal_emb_forward.1} parent=0 // pred_fallthru
    _
  // Predicated region
  $region14: #{temporal_emb_forward.1} parent=0 // pred_check
    _
  $region15: #{temporal_emb_forward.1} parent=0 // pred_check_branch
    %28 = sbr.rel (0) target = $region17
  $region16: #{temporal_emb_forward.1} parent=0 // pred_region
    _
  $region17: #{temporal_emb_forward.1} parent=0 // pred_fallthru
    _
  // Predicated region
  $region18: #{temporal_emb_forward.1} parent=0 // pred_check
    _
  $region19: #{temporal_emb_forward.1} parent=0 // pred_check_branch
    %30 = sbr.rel (0) target = $region21
  $region20: #{temporal_emb_forward.1} parent=0 // pred_region
    _
  $region21: #{temporal_emb_forward.1} parent=0 // pred_fallthru
    _
  // Predicated region
  $region22: #{temporal_emb_forward.1} parent=0 // pred_check
    _
  $region23: #{temporal_emb_forward.1} parent=0 // pred_check_branch
    %32 = sbr.rel (0) target = $region25
  $region24: #{temporal_emb_forward.1} parent=0 // pred_region
    _
  $region25: #{temporal_emb_forward.1} parent=0 // pred_fallthru
    _
  // Predicated region
  $region26: #{temporal_emb_forward.1} parent=0 // pred_check
    _
  $region27: #{temporal_emb_forward.1} parent=0 // pred_check_branch
    %34 = sbr.rel (0) target = $region29
  $region28: #{temporal_emb_forward.1} parent=0 // pred_region
    _
  $region29: #{temporal_emb_forward.1} parent=0 // pred_fallthru
    _
  // Predicated region
  $region30: #{temporal_emb_forward.1} parent=0 // pred_check
    _
  $region31: #{temporal_emb_forward.1} parent=0 // pred_check_branch
    %36 = sbr.rel (0) target = $region33
  $region32: #{temporal_emb_forward.1} parent=0 // pred_region
    _
  $region33: #{temporal_emb_forward.1} parent=0 // pred_fallthru
    _
  // Predicated region
  $region34: #{temporal_emb_forward.1} parent=0 // pred_check
    _
  $region35: #{temporal_emb_forward.1} parent=0 // pred_check_branch
    %38 = sbr.rel (0) target = $region37
  $region36: #{temporal_emb_forward.1} parent=0 // pred_region
    _
  $region37: #{temporal_emb_forward.1} parent=0 // pred_fallthru
    _
  // Predicated region
  $region38: #{temporal_emb_forward.1} parent=0 // pred_check
    _
  $region39: #{temporal_emb_forward.1} parent=0 // pred_check_branch
    %40 = sbr.rel (0) target = $region41
  $region40: #{temporal_emb_forward.1} parent=0 // pred_region
    _
  $region41: #{temporal_emb_forward.1} parent=0 // pred_fallthru
    _
  // Predicated region
  $region42: #{temporal_emb_forward.1} parent=0 // pred_check
    _
  $region43: #{temporal_emb_forward.1} parent=0 // pred_check_branch
    %42 = sbr.rel (0) target = $region45
  $region44: #{temporal_emb_forward.1} parent=0 // pred_region
    _
  $region45: #{temporal_emb_forward.1} parent=0 // pred_fallthru
    _
  // Predicated region
  $region46: #{temporal_emb_forward.1} parent=0 // pred_check
    _
  $region47: #{temporal_emb_forward.1} parent=0 // pred_check_branch
    %44 = sbr.rel (0) target = $region49
  $region48: #{temporal_emb_forward.1} parent=0 // pred_region
    _
  $region49: #{temporal_emb_forward.1} parent=0 // pred_fallthru
    _
  // Predicated region
  $region50: #{temporal_emb_forward.1} parent=0 // pred_check
    _
  $region51: #{temporal_emb_forward.1} parent=0 // pred_check_branch
    %46 = sbr.rel (0) target = $region53
  $region52: #{temporal_emb_forward.1} parent=0 // pred_region
    _
  $region53: #{temporal_emb_forward.1} parent=0 // pred_fallthru
    _
  // Predicated region
  $region54: #{temporal_emb_forward.1} parent=0 // pred_check
    _
  $region55: #{temporal_emb_forward.1} parent=0 // pred_check_branch
    %48 = sbr.rel (0) target = $region57
  $region56: #{temporal_emb_forward.1} parent=0 // pred_region
    _
  $region57: #{temporal_emb_forward.1} parent=0 // pred_fallthru
    _
  // Predicated region
  $region58: #{temporal_emb_forward.1} parent=0 // pred_check
    _
  $region59: #{temporal_emb_forward.1} parent=0 // pred_check_branch
    %50 = sbr.rel (0) target = $region61
  $region60: #{temporal_emb_forward.1} parent=0 // pred_region
    _
  $region61: #{temporal_emb_forward.1} parent=0 // pred_fallthru
    _
  // Predicated region
  $region62: #{temporal_emb_forward.1} parent=0 // pred_check
    _
  $region63: #{temporal_emb_forward.1} parent=0 // pred_check_branch
    %52 = sbr.rel (0) target = $region65
  $region64: #{temporal_emb_forward.1} parent=0 // pred_region
    _
  $region65: #{temporal_emb_forward.1} parent=0 // pred_fallthru
    _
  %v54 = vld [vmem:[%s1] sm:$0xf]
  %v55 = vld [vmem:[%s1 + $0x4] sm:$0xf]
  %v56 = vld [vmem:[%s1 + $0x8] sm:$0xf]
  %v57 = vld [vmem:[%s1 + $0xc] sm:$0xf]
  %v58 = vld [vmem:[%s1 + $0x10] sm:$0xf]
  %v59 = vld [vmem:[%s1 + $0x14] sm:$0xf]
  %v60 = vld [vmem:[%s1 + $0x18] sm:$0xf]
  %v61 = vld [vmem:[%s1 + $0x1c] sm:$0xf]
  %v62 = vld [vmem:[%s0] sm:$0xf]
  %v63 = vld [vmem:[%s0 + $0x4] sm:$0xf]
  %v64 = vld [vmem:[%s0 + $0x8] sm:$0xf]
  %v65 = vld [vmem:[%s0 + $0xc] sm:$0xf]
  %v66 = vld [vmem:[%s0 + $0x10] sm:$0xf]
  %v67 = vld [vmem:[%s0 + $0x14] sm:$0xf]
  %v68 = vld [vmem:[%s0 + $0x18] sm:$0xf]
  %v69 = vld [vmem:[%s0 + $0x1c] sm:$0xf]
  %v70 = vld [vmem:[%s4] sm:$0xf]
  %v71 = vld [vmem:[%s4 + $0x4] sm:$0xf]
  %v72 = vld [vmem:[%s4 + $0x8] sm:$0xf]
  %v73 = vld [vmem:[%s4 + $0xc] sm:$0xf]
  %v74 = vld [vmem:[%s4 + $0x10] sm:$0xf]
  %v75 = vld [vmem:[%s4 + $0x14] sm:$0xf]
  %v76 = vld [vmem:[%s4 + $0x18] sm:$0xf]
  %v77 = vld [vmem:[%s4 + $0x1c] sm:$0xf]
  %v78 = vld [vmem:[%s4 + $0x20] sm:$0xf]
  %v79 = vld [vmem:[%s4 + $0x24] sm:$0xf]
  %v80 = vld [vmem:[%s4 + $0x28] sm:$0xf]
  %v81 = vld [vmem:[%s4 + $0x2c] sm:$0xf]
  %v82 = vld [vmem:[%s4 + $0x30] sm:$0xf]
  %v83 = vld [vmem:[%s4 + $0x34] sm:$0xf]
  %v84 = vld [vmem:[%s4 + $0x38] sm:$0xf]
  %v85 = vld [vmem:[%s4 + $0x3c] sm:$0xf]
  %v86 = vld [vmem:[%s7] sm:$0xf]
  %v87 = vld [vmem:[%s7 + $0x4] sm:$0xf]
  %v88 = vld [vmem:[%s7 + $0x8] sm:$0xf]
  %v89 = vld [vmem:[%s7 + $0xc] sm:$0xf]
  %v98 = vunpack.c.l.b16 %v54
  %v99 = vunpack.c.l.b16 %v55
  %v100 = vunpack.c.l.b16 %v56
  %v101 = vunpack.c.l.b16 %v57
  %v102 = vunpack.c.l.b16 %v58
  %v103 = vunpack.c.l.b16 %v59
  %v104 = vunpack.c.l.b16 %v60
  %v105 = vunpack.c.l.b16 %v61
  %v106 = vpack.c.b16 %v99, %v98
  %v107 = vpack.c.b16 %v101, %v100
  %v108 = vpack.c.b16 %v103, %v102
  %v109 = vpack.c.b16 %v105, %v104
  %v114 = vunpack.c.l.b16 %v86
  %v115 = vunpack.c.l.b16 %v87
  %v116 = vunpack.c.l.b16 %v88
  %v117 = vunpack.c.l.b16 %v89
  %v118 = vpack.c.b16 %v115, %v114
  %v119 = vpack.c.b16 %v117, %v116
  %vm122 = vcmask 261120
  %v124 = vsel %vm122, %v106, 0
  %v127 = vsel %vm122, %v107, 0
  %v130 = vsel %vm122, %v108, 0
  %v133 = vsel %vm122, %v109, 0
  %135 = vmatprep.subr.bf16.mxu0 0
  %136 = vmatpush1.bf16.msra.mxu0 0
  %137 = vmatprep.subr.bf16.mxu0 0
  %138 = vmatpush1.bf16.msra.mxu0 0
  %139 = vmatprep.subr.bf16.mxu0 0
  %140 = vmatpush1.bf16.msra.mxu0 0
  %141 = vmatprep.subr.bf16.mxu0 0
  %142 = vmatpush1.bf16.msra.mxu0 0
  %143 = vmatprep.subr.bf16.mxu0 0
  %144 = vmatpush1.bf16.msra.mxu0 0
  %145 = vmatprep.subr.bf16.mxu0 0
  %146 = vmatpush1.bf16.msra.mxu0 0
  %147 = vmatprep.subr.bf16.mxu0 0
  %148 = vmatpush1.bf16.msra.mxu0 %v119
  %149 = vmatprep.subr.bf16.mxu0 0
  %150 = vmatpush1.bf16.msra.mxu0 %v118
  %151 = vmatprep.subr.bf16.mxu0 0
  %152 = vmatpush2.bf16.msra.mxu0 0
  %153 = vmatprep.subr.bf16.mxu0 0
  %154 = vmatpush2.bf16.msra.mxu0 0
  %155 = vmatprep.subr.bf16.mxu0 0
  %156 = vmatpush2.bf16.msra.mxu0 0
  %157 = vmatprep.subr.bf16.mxu0 0
  %158 = vmatpush2.bf16.msra.mxu0 0
  %159 = vmatprep.subr.bf16.mxu0 0
  %160 = vmatpush2.bf16.msra.mxu0 0
  %161 = vmatprep.subr.bf16.mxu0 0
  %162 = vmatpush2.bf16.msra.mxu0 0
  %163 = vmatprep.subr.bf16.mxu0 0
  %164 = vmatpush2.bf16.msra.mxu0 0
  %165 = vmatprep.subr.bf16.mxu0 0
  %166 = vmatpush2.bf16.msra.mxu0 0
  %167 = vmatprep.mubr.bf16.mxu0 0
  %168 = vmatmul.mubr.bf16.gmra.mxu0 %v124
  %v169 = vpop.f32.mrf.mxu0
  %v170 = vadd.f32 0.0, %v169
  %v171 = vpop.f32.mrf.mxu0
  %v172 = vpop.f32.mrf.mxu0
  %v173 = vadd.f32 0.0, %v172
  %v174 = vpop.f32.mrf.mxu0
  %175 = vmatprep.mubr.bf16.mxu0 0
  %176 = vmatmul.mubr.bf16.gmra.mxu0 %v127
  %v177 = vpop.f32.mrf.mxu0
  %v178 = vadd.f32 0.0, %v177
  %v179 = vpop.f32.mrf.mxu0
  %v180 = vpop.f32.mrf.mxu0
  %v181 = vadd.f32 0.0, %v180
  %v182 = vpop.f32.mrf.mxu0
  %183 = vmatprep.mubr.bf16.mxu0 0
  %184 = vmatmul.mubr.bf16.gmra.mxu0 %v130
  %v185 = vpop.f32.mrf.mxu0
  %v186 = vadd.f32 0.0, %v185
  %v187 = vpop.f32.mrf.mxu0
  %v188 = vpop.f32.mrf.mxu0
  %v189 = vadd.f32 0.0, %v188
  %v190 = vpop.f32.mrf.mxu0
  %191 = vmatprep.mubr.bf16.mxu0 0
  %192 = vmatmul.mubr.bf16.gmra.mxu0 %v133
  %v193 = vpop.f32.mrf.mxu0
  %v194 = vadd.f32 0.0, %v193
  %v195 = vpop.f32.mrf.mxu0
  %v196 = vpop.f32.mrf.mxu0
  %v197 = vadd.f32 0.0, %v196
  %v198 = vpop.f32.mrf.mxu0
  %199 = vdwg.mxu0
  %v208 = vunpack.c.l.b16 %v62
  %v209 = vunpack.c.l.b16 %v63
  %v210 = vunpack.c.l.b16 %v64
  %v211 = vunpack.c.l.b16 %v65
  %v212 = vunpack.c.l.b16 %v66
  %v213 = vunpack.c.l.b16 %v67
  %v214 = vunpack.c.l.b16 %v68
  %v215 = vunpack.c.l.b16 %v69
  %v216 = vpack.c.b16 %v209, %v208
  %v217 = vpack.c.b16 %v211, %v210
  %v218 = vpack.c.b16 %v213, %v212
  %v219 = vpack.c.b16 %v215, %v214
  %v240 = vunpack.c.l.b16 %v70
  %v241 = vunpack.c.l.b16 %v71
  %v242 = vunpack.c.l.b16 %v72
  %v243 = vunpack.c.l.b16 %v73
  %v244 = vunpack.c.l.b16 %v74
  %v245 = vunpack.c.l.b16 %v75
  %v246 = vunpack.c.l.b16 %v76
  %v247 = vunpack.c.l.b16 %v77
  %v248 = vunpack.c.l.b16 %v78
  %v249 = vunpack.c.l.b16 %v79
  %v250 = vunpack.c.l.b16 %v80
  %v251 = vunpack.c.l.b16 %v81
  %v252 = vunpack.c.l.b16 %v82
  %v253 = vunpack.c.l.b16 %v83
  %v254 = vunpack.c.l.b16 %v84
  %v255 = vunpack.c.l.b16 %v85
  %v256 = vpack.c.b16 %v241, %v240
  %v257 = vpack.c.b16 %v243, %v242
  %v258 = vpack.c.b16 %v245, %v244
  %v259 = vpack.c.b16 %v247, %v246
  %v260 = vpack.c.b16 %v249, %v248
  %v261 = vpack.c.b16 %v251, %v250
  %v262 = vpack.c.b16 %v253, %v252
  %v263 = vpack.c.b16 %v255, %v254
  %272 = vmatprep.subr.bf16.mxu0 0
  %273 = vmatpush1.bf16.msra.mxu0 %v263
  %274 = vmatprep.subr.bf16.mxu0 0
  %275 = vmatpush1.bf16.msra.mxu0 %v262
  %276 = vmatprep.subr.bf16.mxu0 0
  %277 = vmatpush1.bf16.msra.mxu0 %v261
  %278 = vmatprep.subr.bf16.mxu0 0
  %279 = vmatpush1.bf16.msra.mxu0 %v260
  %280 = vmatprep.subr.bf16.mxu0 0
  %281 = vmatpush1.bf16.msra.mxu0 %v259
  %282 = vmatprep.subr.bf16.mxu0 0
  %283 = vmatpush1.bf16.msra.mxu0 %v258
  %284 = vmatprep.subr.bf16.mxu0 0
  %285 = vmatpush1.bf16.msra.mxu0 %v257
  %286 = vmatprep.subr.bf16.mxu0 0
  %287 = vmatpush1.bf16.msra.mxu0 %v256
  %288 = vmatprep.subr.bf16.mxu0 0
  %289 = vmatpush2.bf16.msra.mxu0 0
  %290 = vmatprep.subr.bf16.mxu0 0
  %291 = vmatpush2.bf16.msra.mxu0 0
  %292 = vmatprep.subr.bf16.mxu0 0
  %293 = vmatpush2.bf16.msra.mxu0 0
  %294 = vmatprep.subr.bf16.mxu0 0
  %295 = vmatpush2.bf16.msra.mxu0 0
  %296 = vmatprep.subr.bf16.mxu0 0
  %297 = vmatpush2.bf16.msra.mxu0 0
  %298 = vmatprep.subr.bf16.mxu0 0
  %299 = vmatpush2.bf16.msra.mxu0 0
  %300 = vmatprep.subr.bf16.mxu0 0
  %301 = vmatpush2.bf16.msra.mxu0 0
  %302 = vmatprep.subr.bf16.mxu0 0
  %303 = vmatpush2.bf16.msra.mxu0 0
  %304 = vmatprep.mubr.bf16.mxu0 0
  %305 = vmatmul.mubr.bf16.gmra.mxu0 %v216
  %v306 = vpop.f32.mrf.mxu0
  %v307 = vadd.f32 %v170, %v306
  %v308 = vpop.f32.mrf.mxu0
  %v309 = vpop.f32.mrf.mxu0
  %v310 = vadd.f32 %v173, %v309
  %v311 = vpop.f32.mrf.mxu0
  %312 = vmatprep.mubr.bf16.mxu0 0
  %313 = vmatmul.mubr.bf16.gmra.mxu0 %v217
  %v314 = vpop.f32.mrf.mxu0
  %v315 = vadd.f32 %v178, %v314
  %v316 = vpop.f32.mrf.mxu0
  %v317 = vpop.f32.mrf.mxu0
  %v318 = vadd.f32 %v181, %v317
  %v319 = vpop.f32.mrf.mxu0
  %320 = vmatprep.mubr.bf16.mxu0 0
  %321 = vmatmul.mubr.bf16.gmra.mxu0 %v218
  %v322 = vpop.f32.mrf.mxu0
  %v323 = vadd.f32 %v186, %v322
  %v324 = vpop.f32.mrf.mxu0
  %v325 = vpop.f32.mrf.mxu0
  %v326 = vadd.f32 %v189, %v325
  %v327 = vpop.f32.mrf.mxu0
  %328 = vmatprep.mubr.bf16.mxu0 0
  %329 = vmatmul.mubr.bf16.gmra.mxu0 %v219
  %v330 = vpop.f32.mrf.mxu0
  %v331 = vadd.f32 %v194, %v330
  %v332 = vpop.f32.mrf.mxu0
  %v333 = vpop.f32.mrf.mxu0
  %v334 = vadd.f32 %v197, %v333
  %v335 = vpop.f32.mrf.mxu0
  %336 = vdwg.mxu0
  %v337 = vld [vmem:[%s8] sm:$0x1]
  %v339 = vlaneseq
  %v340 = vshrl.u32 %v339, 7
  %v341 = vsub.s32 0, %v340
  %v342 = vrot.slane %v337, %v341
  %v344 = vadd.f32 %v307, %v342
  %v345 = vadd.f32 %v310, %v342
  %v346 = vadd.f32 %v315, %v342
  %v347 = vadd.f32 %v318, %v342
  %v348 = vadd.f32 %v323, %v342
  %v349 = vadd.f32 %v326, %v342
  %v350 = vadd.f32 %v331, %v342
  %v351 = vadd.f32 %v334, %v342
  %v352 = vmax.f32 %v344, 0.0
  %v353 = vmax.f32 %v345, 0.0
  %v354 = vmax.f32 %v346, 0.0
  %v355 = vmax.f32 %v347, 0.0
  %v356 = vmax.f32 %v348, 0.0
  %v357 = vmax.f32 %v349, 0.0
  %v358 = vmax.f32 %v350, 0.0
  %v359 = vmax.f32 %v351, 0.0
  %v360 = vld [vmem:[%s2] sm:$0xf]
  %v361 = vld [vmem:[%s2 + $0x4] sm:$0xf]
  %v362 = vld [vmem:[%s2 + $0x8] sm:$0xf]
  %v363 = vld [vmem:[%s2 + $0xc] sm:$0xf]
  %v364 = vld [vmem:[%s2 + $0x10] sm:$0xf]
  %v365 = vld [vmem:[%s2 + $0x14] sm:$0xf]
  %v366 = vld [vmem:[%s2 + $0x18] sm:$0xf]
  %v367 = vld [vmem:[%s2 + $0x1c] sm:$0xf]
  %v368 = vld [vmem:[%s6] sm:$0xf]
  %v369 = vld [vmem:[%s6 + $0x4] sm:$0x1]
  %v378 = vunpack.c.l.b16 %v360
  %v379 = vunpack.c.l.b16 %v361
  %v380 = vunpack.c.l.b16 %v362
  %v381 = vunpack.c.l.b16 %v363
  %v382 = vunpack.c.l.b16 %v364
  %v383 = vunpack.c.l.b16 %v365
  %v384 = vunpack.c.l.b16 %v366
  %v385 = vunpack.c.l.b16 %v367
  %v386 = vpack.c.b16 %v379, %v378
  %v387 = vpack.c.b16 %v381, %v380
  %v388 = vpack.c.b16 %v383, %v382
  %v389 = vpack.c.b16 %v385, %v384
  %v392 = vunpack.c.l.b16 %v368
  %v393 = vunpack.c.l.b16 %v369
  %v394 = vpack.c.b16 %v393, %v392
  %vm395 = vcmask 80896
  %v397 = vsel %vm395, %v386, 0
  %v400 = vsel %vm395, %v387, 0
  %v403 = vsel %vm395, %v388, 0
  %v406 = vsel %vm395, %v389, 0
  %vm408 = vcmask 1044480
  %v410 = vsel %vm408, %v394, 0
  %412 = vmatprep.subr.bf16.mxu0 0
  %413 = vmatpush1.bf16.msra.mxu0 0
  %414 = vmatprep.subr.bf16.mxu0 0
  %415 = vmatpush1.bf16.msra.mxu0 0
  %416 = vmatprep.subr.bf16.mxu0 0
  %417 = vmatpush1.bf16.msra.mxu0 0
  %418 = vmatprep.subr.bf16.mxu0 0
  %419 = vmatpush1.bf16.msra.mxu0 0
  %420 = vmatprep.subr.bf16.mxu0 0
  %421 = vmatpush1.bf16.msra.mxu0 0
  %422 = vmatprep.subr.bf16.mxu0 0
  %423 = vmatpush1.bf16.msra.mxu0 0
  %424 = vmatprep.subr.bf16.mxu0 0
  %425 = vmatpush1.bf16.msra.mxu0 0
  %426 = vmatprep.subr.bf16.mxu0 0
  %427 = vmatpush1.bf16.msra.mxu0 %v410
  %428 = vmatprep.subr.bf16.mxu0 0
  %429 = vmatpush2.bf16.msra.mxu0 0
  %430 = vmatprep.subr.bf16.mxu0 0
  %431 = vmatpush2.bf16.msra.mxu0 0
  %432 = vmatprep.subr.bf16.mxu0 0
  %433 = vmatpush2.bf16.msra.mxu0 0
  %434 = vmatprep.subr.bf16.mxu0 0
  %435 = vmatpush2.bf16.msra.mxu0 0
  %436 = vmatprep.subr.bf16.mxu0 0
  %437 = vmatpush2.bf16.msra.mxu0 0
  %438 = vmatprep.subr.bf16.mxu0 0
  %439 = vmatpush2.bf16.msra.mxu0 0
  %440 = vmatprep.subr.bf16.mxu0 0
  %441 = vmatpush2.bf16.msra.mxu0 0
  %442 = vmatprep.subr.bf16.mxu0 0
  %443 = vmatpush2.bf16.msra.mxu0 0
  %444 = vmatprep.mubr.bf16.mxu0 0
  %445 = vmatmul.mubr.bf16.gmra.mxu0 %v397
  %v446 = vpop.f32.mrf.mxu0
  %v447 = vadd.f32 0.0, %v446
  %v448 = vpop.f32.mrf.mxu0
  %v449 = vpop.f32.mrf.mxu0
  %v450 = vadd.f32 0.0, %v449
  %v451 = vpop.f32.mrf.mxu0
  %452 = vmatprep.mubr.bf16.mxu0 0
  %453 = vmatmul.mubr.bf16.gmra.mxu0 %v400
  %v454 = vpop.f32.mrf.mxu0
  %v455 = vadd.f32 0.0, %v454
  %v456 = vpop.f32.mrf.mxu0
  %v457 = vpop.f32.mrf.mxu0
  %v458 = vadd.f32 0.0, %v457
  %v459 = vpop.f32.mrf.mxu0
  %460 = vmatprep.mubr.bf16.mxu0 0
  %461 = vmatmul.mubr.bf16.gmra.mxu0 %v403
  %v462 = vpop.f32.mrf.mxu0
  %v463 = vadd.f32 0.0, %v462
  %v464 = vpop.f32.mrf.mxu0
  %v465 = vpop.f32.mrf.mxu0
  %v466 = vadd.f32 0.0, %v465
  %v467 = vpop.f32.mrf.mxu0
  %468 = vmatprep.mubr.bf16.mxu0 0
  %469 = vmatmul.mubr.bf16.gmra.mxu0 %v406
  %v470 = vpop.f32.mrf.mxu0
  %v471 = vadd.f32 0.0, %v470
  %v472 = vpop.f32.mrf.mxu0
  %v473 = vpop.f32.mrf.mxu0
  %v474 = vadd.f32 0.0, %v473
  %v475 = vpop.f32.mrf.mxu0
  %476 = vdwg.mxu0
  %v477 = vmax.f32 %v447, 0.0
  %v478 = vmax.f32 %v450, 0.0
  %v479 = vmax.f32 %v455, 0.0
  %v480 = vmax.f32 %v458, 0.0
  %v481 = vmax.f32 %v463, 0.0
  %v482 = vmax.f32 %v466, 0.0
  %v483 = vmax.f32 %v471, 0.0
  %v484 = vmax.f32 %v474, 0.0
  %vm485 = vcmask 523264
  %v486 = vsel %vm485, %v477, -inf
  %487 = vmax.xlane.f32.xlu0 %v486
  %v488 = vpop.xlane.xlu0 %487
  %v489 = vsel %vm485, %v478, -inf
  %490 = vmax.xlane.f32.xlu0 %v489
  %v491 = vpop.xlane.xlu0 %490
  %v492 = vsel %vm485, %v479, -inf
  %493 = vmax.xlane.f32.xlu0 %v492
  %v494 = vpop.xlane.xlu0 %493
  %v495 = vsel %vm485, %v480, -inf
  %496 = vmax.xlane.f32.xlu0 %v495
  %v497 = vpop.xlane.xlu0 %496
  %v498 = vsel %vm485, %v481, -inf
  %499 = vmax.xlane.f32.xlu0 %v498
  %v500 = vpop.xlane.xlu0 %499
  %v501 = vsel %vm485, %v482, -inf
  %502 = vmax.xlane.f32.xlu0 %v501
  %v503 = vpop.xlane.xlu0 %502
  %v504 = vsel %vm485, %v483, -inf
  %505 = vmax.xlane.f32.xlu0 %v504
  %v506 = vpop.xlane.xlu0 %505
  %v507 = vsel %vm485, %v484, -inf
  %508 = vmax.xlane.f32.xlu0 %v507
  %v509 = vpop.xlane.xlu0 %508
  %v510 = vsub.f32 %v477, %v488
  %v511 = vsub.f32 %v478, %v491
  %v512 = vsub.f32 %v479, %v494
  %v513 = vsub.f32 %v480, %v497
  %v514 = vsub.f32 %v481, %v500
  %v515 = vsub.f32 %v482, %v503
  %v516 = vsub.f32 %v483, %v506
  %v517 = vsub.f32 %v484, %v509
  %v518 = vmul.f32 %v510, 1.442695
  %v519 = vpow.pop %v518
  %v520 = vmul.f32 %v511, 1.442695
  %v521 = vpow.pop %v520
  %v522 = vmul.f32 %v512, 1.442695
  %v523 = vpow.pop %v522
  %v524 = vmul.f32 %v513, 1.442695
  %v525 = vpow.pop %v524
  %v526 = vmul.f32 %v514, 1.442695
  %v527 = vpow.pop %v526
  %v528 = vmul.f32 %v515, 1.442695
  %v529 = vpow.pop %v528
  %v530 = vmul.f32 %v516, 1.442695
  %v531 = vpow.pop %v530
  %v532 = vmul.f32 %v517, 1.442695
  %v533 = vpow.pop %v532
  %v534 = vsel %vm485, %v519, 0.0
  %535 = vadd.xlane.f32.xlu0 %v534
  %v536 = vpop.xlane.xlu0 %535
  %v537 = vsel %vm485, %v521, 0.0
  %538 = vadd.xlane.f32.xlu0 %v537
  %v539 = vpop.xlane.xlu0 %538
  %v540 = vsel %vm485, %v523, 0.0
  %541 = vadd.xlane.f32.xlu0 %v540
  %v542 = vpop.xlane.xlu0 %541
  %v543 = vsel %vm485, %v525, 0.0
  %544 = vadd.xlane.f32.xlu0 %v543
  %v545 = vpop.xlane.xlu0 %544
  %v546 = vsel %vm485, %v527, 0.0
  %547 = vadd.xlane.f32.xlu0 %v546
  %v548 = vpop.xlane.xlu0 %547
  %v549 = vsel %vm485, %v529, 0.0
  %550 = vadd.xlane.f32.xlu0 %v549
  %v551 = vpop.xlane.xlu0 %550
  %v552 = vsel %vm485, %v531, 0.0
  %553 = vadd.xlane.f32.xlu0 %v552
  %v554 = vpop.xlane.xlu0 %553
  %v555 = vsel %vm485, %v533, 0.0
  %556 = vadd.xlane.f32.xlu0 %v555
  %v557 = vpop.xlane.xlu0 %556
  %v558 = vrcp.pop %v536
  %v559 = vmul.f32 %v519, %v558
  %v560 = vrcp.pop %v539
  %v561 = vmul.f32 %v521, %v560
  %v562 = vrcp.pop %v542
  %v563 = vmul.f32 %v523, %v562
  %v564 = vrcp.pop %v545
  %v565 = vmul.f32 %v525, %v564
  %v566 = vrcp.pop %v548
  %v567 = vmul.f32 %v527, %v566
  %v568 = vrcp.pop %v551
  %v569 = vmul.f32 %v529, %v568
  %v570 = vrcp.pop %v554
  %v571 = vmul.f32 %v531, %v570
  %v572 = vrcp.pop %v557
  %v573 = vmul.f32 %v533, %v572
  %v574 = vpack.c.bf16 %v561, %v559
  %v575 = vpack.c.bf16 %v565, %v563
  %v576 = vpack.c.bf16 %v569, %v567
  %v577 = vpack.c.bf16 %v573, %v571
  %v578 = vld [vmem:[%s5] sm:$0xf]
  %v579 = vld [vmem:[%s5 + $0x4] sm:$0xf]
  %v580 = vld [vmem:[%s5 + $0x8] sm:$0xf]
  %v581 = vld [vmem:[%s5 + $0xc] sm:$0xf]
  %v582 = vld [vmem:[%s5 + $0x10] sm:$0xf]
  %v583 = vld [vmem:[%s5 + $0x14] sm:$0xf]
  %v584 = vld [vmem:[%s5 + $0x18] sm:$0xf]
  %v585 = vld [vmem:[%s5 + $0x1c] sm:$0xf]
  %v594 = vunpack.c.l.b16 %v578
  %v595 = vunpack.c.l.b16 %v579
  %v596 = vunpack.c.l.b16 %v580
  %v597 = vunpack.c.l.b16 %v581
  %v598 = vunpack.c.l.b16 %v582
  %v599 = vunpack.c.l.b16 %v583
  %v600 = vunpack.c.l.b16 %v584
  %v601 = vunpack.c.l.b16 %v585
  %v602 = vpack.c.b16 %v595, %v594
  %v603 = vpack.c.b16 %v597, %v596
  %v604 = vpack.c.b16 %v599, %v598
  %v605 = vpack.c.b16 %v601, %v600
  %v611 = vsel %vm485, %v574, 0
  %v614 = vsel %vm485, %v575, 0
  %v617 = vsel %vm485, %v576, 0
  %v620 = vsel %vm485, %v577, 0
  %622 = vmatprep.subr.bf16.mxu0 0
  %623 = vmatpush1.bf16.msra.mxu0 0
  %624 = vmatprep.subr.bf16.mxu0 0
  %625 = vmatpush1.bf16.msra.mxu0 0
  %626 = vmatprep.subr.bf16.mxu0 0
  %627 = vmatpush1.bf16.msra.mxu0 0
  %628 = vmatprep.subr.bf16.mxu0 0
  %629 = vmatpush1.bf16.msra.mxu0 0
  %630 = vmatprep.subr.bf16.mxu0 0
  %631 = vmatpush1.bf16.msra.mxu0 %v605
  %632 = vmatprep.subr.bf16.mxu0 0
  %633 = vmatpush1.bf16.msra.mxu0 %v604
  %634 = vmatprep.subr.bf16.mxu0 0
  %635 = vmatpush1.bf16.msra.mxu0 %v603
  %636 = vmatprep.subr.bf16.mxu0 0
  %637 = vmatpush1.bf16.msra.mxu0 %v602
  %638 = vmatprep.subr.bf16.mxu0 0
  %639 = vmatpush2.bf16.msra.mxu0 0
  %640 = vmatprep.subr.bf16.mxu0 0
  %641 = vmatpush2.bf16.msra.mxu0 0
  %642 = vmatprep.subr.bf16.mxu0 0
  %643 = vmatpush2.bf16.msra.mxu0 0
  %644 = vmatprep.subr.bf16.mxu0 0
  %645 = vmatpush2.bf16.msra.mxu0 0
  %646 = vmatprep.subr.bf16.mxu0 0
  %647 = vmatpush2.bf16.msra.mxu0 0
  %648 = vmatprep.subr.bf16.mxu0 0
  %649 = vmatpush2.bf16.msra.mxu0 0
  %650 = vmatprep.subr.bf16.mxu0 0
  %651 = vmatpush2.bf16.msra.mxu0 0
  %652 = vmatprep.subr.bf16.mxu0 0
  %653 = vmatpush2.bf16.msra.mxu0 0
  %654 = vmatprep.mubr.bf16.mxu0 0
  %655 = vmatmul.mubr.bf16.gmra.mxu0 %v611
  %v656 = vpop.f32.mrf.mxu0
  %v657 = vadd.f32 0.0, %v656
  %v658 = vpop.f32.mrf.mxu0
  %v659 = vpop.f32.mrf.mxu0
  %v660 = vadd.f32 0.0, %v659
  %v661 = vpop.f32.mrf.mxu0
  %662 = vmatprep.mubr.bf16.mxu0 0
  %663 = vmatmul.mubr.bf16.gmra.mxu0 %v614
  %v664 = vpop.f32.mrf.mxu0
  %v665 = vadd.f32 0.0, %v664
  %v666 = vpop.f32.mrf.mxu0
  %v667 = vpop.f32.mrf.mxu0
  %v668 = vadd.f32 0.0, %v667
  %v669 = vpop.f32.mrf.mxu0
  %670 = vmatprep.mubr.bf16.mxu0 0
  %671 = vmatmul.mubr.bf16.gmra.mxu0 %v617
  %v672 = vpop.f32.mrf.mxu0
  %v673 = vadd.f32 0.0, %v672
  %v674 = vpop.f32.mrf.mxu0
  %v675 = vpop.f32.mrf.mxu0
  %v676 = vadd.f32 0.0, %v675
  %v677 = vpop.f32.mrf.mxu0
  %678 = vmatprep.mubr.bf16.mxu0 0
  %679 = vmatmul.mubr.bf16.gmra.mxu0 %v620
  %v680 = vpop.f32.mrf.mxu0
  %v681 = vadd.f32 0.0, %v680
  %v682 = vpop.f32.mrf.mxu0
  %v683 = vpop.f32.mrf.mxu0
  %v684 = vadd.f32 0.0, %v683
  %v685 = vpop.f32.mrf.mxu0
  %686 = vdwg.mxu0
  %v687 = vld [vmem:[%s9] sm:$0xf]
  %v688 = vld [vmem:[%s9 + $0x4] sm:$0xf]
  %v689 = vld [vmem:[%s9 + $0x8] sm:$0xf]
  %v690 = vld [vmem:[%s9 + $0xc] sm:$0xf]
  %v691 = vpack.c.bf16 %v660, %v657
  %v692 = vpack.c.bf16 %v668, %v665
  %v693 = vpack.c.bf16 %v676, %v673
  %v694 = vpack.c.bf16 %v684, %v681
  %v695 = vld [vmem:[%s10] sm:$0xf]
  %v696 = vld [vmem:[%s10 + $0x4] sm:$0xf]
  %v697 = vld [vmem:[%s10 + $0x8] sm:$0xf]
  %v698 = vld [vmem:[%s10 + $0xc] sm:$0xf]
  %v703 = vunpack.c.l.b16 %v695
  %v704 = vunpack.c.l.b16 %v696
  %v705 = vunpack.c.l.b16 %v697
  %v706 = vunpack.c.l.b16 %v698
  %v707 = vpack.c.b16 %v704, %v703
  %v708 = vpack.c.b16 %v706, %v705
  %v712 = vsel %vm122, %v691, 0
  %v715 = vsel %vm122, %v692, 0
  %v718 = vsel %vm122, %v693, 0
  %v721 = vsel %vm122, %v694, 0
  %723 = vmatprep.subr.bf16.mxu0 0
  %724 = vmatpush1.bf16.msra.mxu0 0
  %725 = vmatprep.subr.bf16.mxu0 0
  %726 = vmatpush1.bf16.msra.mxu0 0
  %727 = vmatprep.subr.bf16.mxu0 0
  %728 = vmatpush1.bf16.msra.mxu0 0
  %729 = vmatprep.subr.bf16.mxu0 0
  %730 = vmatpush1.bf16.msra.mxu0 0
  %731 = vmatprep.subr.bf16.mxu0 0
  %732 = vmatpush1.bf16.msra.mxu0 0
  %733 = vmatprep.subr.bf16.mxu0 0
  %734 = vmatpush1.bf16.msra.mxu0 0
  %735 = vmatprep.subr.bf16.mxu0 0
  %736 = vmatpush1.bf16.msra.mxu0 %v708
  %737 = vmatprep.subr.bf16.mxu0 0
  %738 = vmatpush1.bf16.msra.mxu0 %v707
  %739 = vmatprep.subr.bf16.mxu0 0
  %740 = vmatpush2.bf16.msra.mxu0 0
  %741 = vmatprep.subr.bf16.mxu0 0
  %742 = vmatpush2.bf16.msra.mxu0 0
  %743 = vmatprep.subr.bf16.mxu0 0
  %744 = vmatpush2.bf16.msra.mxu0 0
  %745 = vmatprep.subr.bf16.mxu0 0
  %746 = vmatpush2.bf16.msra.mxu0 0
  %747 = vmatprep.subr.bf16.mxu0 0
  %748 = vmatpush2.bf16.msra.mxu0 0
  %749 = vmatprep.subr.bf16.mxu0 0
  %750 = vmatpush2.bf16.msra.mxu0 0
  %751 = vmatprep.subr.bf16.mxu0 0
  %752 = vmatpush2.bf16.msra.mxu0 0
  %753 = vmatprep.subr.bf16.mxu0 0
  %754 = vmatpush2.bf16.msra.mxu0 0
  %755 = vmatprep.mubr.bf16.mxu0 0
  %756 = vmatmul.mubr.bf16.gmra.mxu0 %v712
  %v757 = vpop.f32.mrf.mxu0
  %v758 = vadd.f32 0.0, %v757
  %v759 = vpop.f32.mrf.mxu0
  %v760 = vpop.f32.mrf.mxu0
  %v761 = vadd.f32 0.0, %v760
  %v762 = vpop.f32.mrf.mxu0
  %763 = vmatprep.mubr.bf16.mxu0 0
  %764 = vmatmul.mubr.bf16.gmra.mxu0 %v715
  %v765 = vpop.f32.mrf.mxu0
  %v766 = vadd.f32 0.0, %v765
  %v767 = vpop.f32.mrf.mxu0
  %v768 = vpop.f32.mrf.mxu0
  %v769 = vadd.f32 0.0, %v768
  %v770 = vpop.f32.mrf.mxu0
  %771 = vmatprep.mubr.bf16.mxu0 0
  %772 = vmatmul.mubr.bf16.gmra.mxu0 %v718
  %v773 = vpop.f32.mrf.mxu0
  %v774 = vadd.f32 0.0, %v773
  %v775 = vpop.f32.mrf.mxu0
  %v776 = vpop.f32.mrf.mxu0
  %v777 = vadd.f32 0.0, %v776
  %v778 = vpop.f32.mrf.mxu0
  %779 = vmatprep.mubr.bf16.mxu0 0
  %780 = vmatmul.mubr.bf16.gmra.mxu0 %v721
  %v781 = vpop.f32.mrf.mxu0
  %v782 = vadd.f32 0.0, %v781
  %v783 = vpop.f32.mrf.mxu0
  %v784 = vpop.f32.mrf.mxu0
  %v785 = vadd.f32 0.0, %v784
  %v786 = vpop.f32.mrf.mxu0
  %787 = vdwg.mxu0
  %v792 = vunpack.c.l.b16 %v687
  %v793 = vunpack.c.l.b16 %v688
  %v794 = vunpack.c.l.b16 %v689
  %v795 = vunpack.c.l.b16 %v690
  %v796 = vpack.c.b16 %v793, %v792
  %v797 = vpack.c.b16 %v795, %v794
  %800 = vmatprep.subr.bf16.mxu0 0
  %801 = vmatpush1.bf16.msra.mxu0 0
  %802 = vmatprep.subr.bf16.mxu0 0
  %803 = vmatpush1.bf16.msra.mxu0 0
  %804 = vmatprep.subr.bf16.mxu0 0
  %805 = vmatpush1.bf16.msra.mxu0 0
  %806 = vmatprep.subr.bf16.mxu0 0
  %807 = vmatpush1.bf16.msra.mxu0 0
  %808 = vmatprep.subr.bf16.mxu0 0
  %809 = vmatpush1.bf16.msra.mxu0 0
  %810 = vmatprep.subr.bf16.mxu0 0
  %811 = vmatpush1.bf16.msra.mxu0 0
  %812 = vmatprep.subr.bf16.mxu0 0
  %813 = vmatpush1.bf16.msra.mxu0 %v797
  %814 = vmatprep.subr.bf16.mxu0 0
  %815 = vmatpush1.bf16.msra.mxu0 %v796
  %816 = vmatprep.subr.bf16.mxu0 0
  %817 = vmatpush2.bf16.msra.mxu0 0
  %818 = vmatprep.subr.bf16.mxu0 0
  %819 = vmatpush2.bf16.msra.mxu0 0
  %820 = vmatprep.subr.bf16.mxu0 0
  %821 = vmatpush2.bf16.msra.mxu0 0
  %822 = vmatprep.subr.bf16.mxu0 0
  %823 = vmatpush2.bf16.msra.mxu0 0
  %824 = vmatprep.subr.bf16.mxu0 0
  %825 = vmatpush2.bf16.msra.mxu0 0
  %826 = vmatprep.subr.bf16.mxu0 0
  %827 = vmatpush2.bf16.msra.mxu0 0
  %828 = vmatprep.subr.bf16.mxu0 0
  %829 = vmatpush2.bf16.msra.mxu0 0
  %830 = vmatprep.subr.bf16.mxu0 0
  %831 = vmatpush2.bf16.msra.mxu0 0
  %832 = vmatprep.mubr.bf16.mxu0 0
  %833 = vmatmul.mubr.bf16.gmra.mxu0 %v124
  %v834 = vpop.f32.mrf.mxu0
  %v835 = vadd.f32 %v758, %v834
  %v836 = vpop.f32.mrf.mxu0
  %v837 = vpop.f32.mrf.mxu0
  %v838 = vadd.f32 %v761, %v837
  %v839 = vpop.f32.mrf.mxu0
  %840 = vmatprep.mubr.bf16.mxu0 0
  %841 = vmatmul.mubr.bf16.gmra.mxu0 %v127
  %v842 = vpop.f32.mrf.mxu0
  %v843 = vadd.f32 %v766, %v842
  %v844 = vpop.f32.mrf.mxu0
  %v845 = vpop.f32.mrf.mxu0
  %v846 = vadd.f32 %v769, %v845
  %v847 = vpop.f32.mrf.mxu0
  %848 = vmatprep.mubr.bf16.mxu0 0
  %849 = vmatmul.mubr.bf16.gmra.mxu0 %v130
  %v850 = vpop.f32.mrf.mxu0
  %v851 = vadd.f32 %v774, %v850
  %v852 = vpop.f32.mrf.mxu0
  %v853 = vpop.f32.mrf.mxu0
  %v854 = vadd.f32 %v777, %v853
  %v855 = vpop.f32.mrf.mxu0
  %856 = vmatprep.mubr.bf16.mxu0 0
  %857 = vmatmul.mubr.bf16.gmra.mxu0 %v133
  %v858 = vpop.f32.mrf.mxu0
  %v859 = vadd.f32 %v782, %v858
  %v860 = vpop.f32.mrf.mxu0
  %v861 = vpop.f32.mrf.mxu0
  %v862 = vadd.f32 %v785, %v861
  %v863 = vpop.f32.mrf.mxu0
  %864 = vdwg.mxu0
  %v865 = vld [vmem:[%s11] sm:$0x1]
  %v867 = vlaneseq
  %v868 = vshrl.u32 %v867, 7
  %v869 = vsub.s32 0, %v868
  %v870 = vrot.slane %v865, %v869
  %v872 = vadd.f32 %v835, %v870
  %v873 = vadd.f32 %v838, %v870
  %v874 = vadd.f32 %v843, %v870
  %v875 = vadd.f32 %v846, %v870
  %v876 = vadd.f32 %v851, %v870
  %v877 = vadd.f32 %v854, %v870
  %v878 = vadd.f32 %v859, %v870
  %v879 = vadd.f32 %v862, %v870
  %v880 = vld [vmem:[%s3] sm:$0xff]
  %v881 = vld [vmem:[%s3 + $0x8] sm:$0xff]
  %v882 = vld [vmem:[%s3 + $0x10] sm:$0xff]
  %v883 = vld [vmem:[%s3 + $0x18] sm:$0xff]
  %v884 = vld [vmem:[%s3 + $0x20] sm:$0xff]
  %v885 = vld [vmem:[%s3 + $0x28] sm:$0xff]
  %v886 = vld [vmem:[%s3 + $0x30] sm:$0xff]
  %v887 = vld [vmem:[%s3 + $0x38] sm:$0xff]
  %v888 = vmul.f32 %v872, %v880
  %v889 = vmul.f32 %v873, %v881
  %v890 = vmul.f32 %v874, %v882
  %v891 = vmul.f32 %v875, %v883
  %v892 = vmul.f32 %v876, %v884
  %v893 = vmul.f32 %v877, %v885
  %v894 = vmul.f32 %v878, %v886
  %v895 = vmul.f32 %v879, %v887
  %v896 = vld [vmem:[%s12] sm:$0xff]
  %v897 = vld [vmem:[%s12 + $0x8] sm:$0xff]
  %v898 = vld [vmem:[%s12 + $0x10] sm:$0xff]
  %v899 = vld [vmem:[%s12 + $0x18] sm:$0xff]
  %v900 = vld [vmem:[%s12 + $0x20] sm:$0xff]
  %vm901 = vcmask 326656
  %v903 = vsel %vm901, %v888, 0
  %v906 = vsel %vm901, %v889, 0
  %v909 = vsel %vm901, %v890, 0
  %v912 = vsel %vm901, %v891, 0
  %v915 = vsel %vm901, %v892, 0
  %v918 = vsel %vm901, %v893, 0
  %v921 = vsel %vm901, %v894, 0
  %v924 = vsel %vm901, %v895, 0
  %926 = vmatprep.subr.mxu0 0.0
  %927 = vmatpush1.msra.mxu0 0.0
  %928 = vmatprep.subr.mxu0 0.0
  %929 = vmatpush1.msra.mxu0 0.0
  %930 = vmatprep.subr.mxu0 0.0
  %931 = vmatpush1.msra.mxu0 0.0
  %932 = vmatprep.subr.mxu0 0.0
  %933 = vmatpush1.msra.mxu0 0.0
  %934 = vmatprep.subr.mxu0 0.0
  %935 = vmatpush1.msra.mxu0 0.0
  %936 = vmatprep.subr.mxu0 0.0
  %937 = vmatpush1.msra.mxu0 0.0
  %938 = vmatprep.subr.mxu0 0.0
  %939 = vmatpush1.msra.mxu0 0.0
  %940 = vmatprep.subr.mxu0 0.0
  %941 = vmatpush1.msra.mxu0 0.0
  %942 = vmatprep.subr.mxu0 0.0
  %943 = vmatpush1.msra.mxu0 0.0
  %944 = vmatprep.subr.mxu0 0.0
  %945 = vmatpush1.msra.mxu0 0.0
  %946 = vmatprep.subr.mxu0 0.0
  %947 = vmatpush1.msra.mxu0 0.0
  %948 = vmatprep.subr.mxu0 0.0
  %949 = vmatpush1.msra.mxu0 %v900
  %950 = vmatprep.subr.mxu0 0.0
  %951 = vmatpush1.msra.mxu0 %v899
  %952 = vmatprep.subr.mxu0 0.0
  %953 = vmatpush1.msra.mxu0 %v898
  %954 = vmatprep.subr.mxu0 0.0
  %955 = vmatpush1.msra.mxu0 %v897
  %956 = vmatprep.subr.mxu0 0.0
  %957 = vmatpush1.msra.mxu0 %v896
  %958 = vmatprep.subr.mxu0 0.0
  %959 = vmatpush2.msra.mxu0 0.0
  %960 = vmatprep.subr.mxu0 0.0
  %961 = vmatpush2.msra.mxu0 0.0
  %962 = vmatprep.subr.mxu0 0.0
  %963 = vmatpush2.msra.mxu0 0.0
  %964 = vmatprep.subr.mxu0 0.0
  %965 = vmatpush2.msra.mxu0 0.0
  %966 = vmatprep.subr.mxu0 0.0
  %967 = vmatpush2.msra.mxu0 0.0
  %968 = vmatprep.subr.mxu0 0.0
  %969 = vmatpush2.msra.mxu0 0.0
  %970 = vmatprep.subr.mxu0 0.0
  %971 = vmatpush2.msra.mxu0 0.0
  %972 = vmatprep.subr.mxu0 0.0
  %973 = vmatpush2.msra.mxu0 0.0
  %974 = vmatprep.subr.mxu0 0.0
  %975 = vmatpush2.msra.mxu0 0.0
  %976 = vmatprep.subr.mxu0 0.0
  %977 = vmatpush2.msra.mxu0 0.0
  %978 = vmatprep.subr.mxu0 0.0
  %979 = vmatpush2.msra.mxu0 0.0
  %980 = vmatprep.subr.mxu0 0.0
  %981 = vmatpush2.msra.mxu0 0.0
  %982 = vmatprep.subr.mxu0 0.0
  %983 = vmatpush2.msra.mxu0 0.0
  %984 = vmatprep.subr.mxu0 0.0
  %985 = vmatpush2.msra.mxu0 0.0
  %986 = vmatprep.subr.mxu0 0.0
  %987 = vmatpush2.msra.mxu0 0.0
  %988 = vmatprep.subr.mxu0 0.0
  %989 = vmatpush2.msra.mxu0 0.0
  %990 = vmatprep.mubr.f32.mxu0 0.0
  %991 = vmatmul.mubr.f32.gmra.mxu0 %v903
  %v992 = vpop.f32.mrf.mxu0
  %v993 = vadd.f32 0.0, %v992
  %v994 = vpop.f32.mrf.mxu0
  %995 = vmatprep.mubr.f32.mxu0 0.0
  %996 = vmatmul.mubr.f32.gmra.mxu0 %v906
  %v997 = vpop.f32.mrf.mxu0
  %v998 = vadd.f32 0.0, %v997
  %v999 = vpop.f32.mrf.mxu0
  %1000 = vmatprep.mubr.f32.mxu0 0.0
  %1001 = vmatmul.mubr.f32.gmra.mxu0 %v909
  %v1002 = vpop.f32.mrf.mxu0
  %v1003 = vadd.f32 0.0, %v1002
  %v1004 = vpop.f32.mrf.mxu0
  %1005 = vmatprep.mubr.f32.mxu0 0.0
  %1006 = vmatmul.mubr.f32.gmra.mxu0 %v912
  %v1007 = vpop.f32.mrf.mxu0
  %v1008 = vadd.f32 0.0, %v1007
  %v1009 = vpop.f32.mrf.mxu0
  %1010 = vmatprep.mubr.f32.mxu0 0.0
  %1011 = vmatmul.mubr.f32.gmra.mxu0 %v915
  %v1012 = vpop.f32.mrf.mxu0
  %v1013 = vadd.f32 0.0, %v1012
  %v1014 = vpop.f32.mrf.mxu0
  %1015 = vmatprep.mubr.f32.mxu0 0.0
  %1016 = vmatmul.mubr.f32.gmra.mxu0 %v918
  %v1017 = vpop.f32.mrf.mxu0
  %v1018 = vadd.f32 0.0, %v1017
  %v1019 = vpop.f32.mrf.mxu0
  %1020 = vmatprep.mubr.f32.mxu0 0.0
  %1021 = vmatmul.mubr.f32.gmra.mxu0 %v921
  %v1022 = vpop.f32.mrf.mxu0
  %v1023 = vadd.f32 0.0, %v1022
  %v1024 = vpop.f32.mrf.mxu0
  %1025 = vmatprep.mubr.f32.mxu0 0.0
  %1026 = vmatmul.mubr.f32.gmra.mxu0 %v924
  %v1027 = vpop.f32.mrf.mxu0
  %v1028 = vadd.f32 0.0, %v1027
  %v1029 = vpop.f32.mrf.mxu0
  %1030 = vdwg.mxu0
  %v1031 = vxor.u32 %v993, 2147483648
  %v1032 = vxor.u32 %v998, 2147483648
  %v1033 = vxor.u32 %v1003, 2147483648
  %v1034 = vxor.u32 %v1008, 2147483648
  %v1035 = vxor.u32 %v1013, 2147483648
  %v1036 = vxor.u32 %v1018, 2147483648
  %v1037 = vxor.u32 %v1023, 2147483648
  %v1038 = vxor.u32 %v1028, 2147483648
  %v1039 = vmul.f32 %v1031, 1.442695
  %v1040 = vpow.pop %v1039
  %v1041 = vmul.f32 %v1032, 1.442695
  %v1042 = vpow.pop %v1041
  %v1043 = vmul.f32 %v1033, 1.442695
  %v1044 = vpow.pop %v1043
  %v1045 = vmul.f32 %v1034, 1.442695
  %v1046 = vpow.pop %v1045
  %v1047 = vmul.f32 %v1035, 1.442695
  %v1048 = vpow.pop %v1047
  %v1049 = vmul.f32 %v1036, 1.442695
  %v1050 = vpow.pop %v1049
  %v1051 = vmul.f32 %v1037, 1.442695
  %v1052 = vpow.pop %v1051
  %v1053 = vmul.f32 %v1038, 1.442695
  %v1054 = vpow.pop %v1053
  %v1055 = vadd.f32 %v1040, 1.0
  %v1056 = vadd.f32 %v1042, 1.0
  %v1057 = vadd.f32 %v1044, 1.0
  %v1058 = vadd.f32 %v1046, 1.0
  %v1059 = vadd.f32 %v1048, 1.0
  %v1060 = vadd.f32 %v1050, 1.0
  %v1061 = vadd.f32 %v1052, 1.0
  %v1062 = vadd.f32 %v1054, 1.0
  %v1063 = vrcp.pop %v1055
  %v1064 = vmul.f32 1.0, %v1063
  %v1065 = vrcp.pop %v1056
  %v1066 = vmul.f32 1.0, %v1065
  %v1067 = vrcp.pop %v1057
  %v1068 = vmul.f32 1.0, %v1067
  %v1069 = vrcp.pop %v1058
  %v1070 = vmul.f32 1.0, %v1069
  %v1071 = vrcp.pop %v1059
  %v1072 = vmul.f32 1.0, %v1071
  %v1073 = vrcp.pop %v1060
  %v1074 = vmul.f32 1.0, %v1073
  %v1075 = vrcp.pop %v1061
  %v1076 = vmul.f32 1.0, %v1075
  %v1077 = vrcp.pop %v1062
  %v1078 = vmul.f32 1.0, %v1077
  %v1079 = vtanh.pop %v993
  %v1080 = vtanh.pop %v998
  %v1081 = vtanh.pop %v1003
  %v1082 = vtanh.pop %v1008
  %v1083 = vtanh.pop %v1013
  %v1084 = vtanh.pop %v1018
  %v1085 = vtanh.pop %v1023
  %v1086 = vtanh.pop %v1028
  %v1087 = vsub.f32 1.0, %v1064
  %v1088 = vsub.f32 1.0, %v1066
  %v1089 = vsub.f32 1.0, %v1068
  %v1090 = vsub.f32 1.0, %v1070
  %v1091 = vsub.f32 1.0, %v1072
  %v1092 = vsub.f32 1.0, %v1074
  %v1093 = vsub.f32 1.0, %v1076
  %v1094 = vsub.f32 1.0, %v1078
  %1103 = vrot.lane.b32.xlu0 %v1079, 126
  %v1104 = vpop.permute.xlu0 %1103
  %1105 = vrot.lane.b32.xlu0 %v1080, 126
  %v1106 = vpop.permute.xlu0 %1105
  %1107 = vrot.lane.b32.xlu0 %v1081, 126
  %v1108 = vpop.permute.xlu0 %1107
  %1109 = vrot.lane.b32.xlu0 %v1082, 126
  %v1110 = vpop.permute.xlu0 %1109
  %1111 = vrot.lane.b32.xlu0 %v1083, 126
  %v1112 = vpop.permute.xlu0 %1111
  %1113 = vrot.lane.b32.xlu0 %v1084, 126
  %v1114 = vpop.permute.xlu0 %1113
  %1115 = vrot.lane.b32.xlu0 %v1085, 126
  %v1116 = vpop.permute.xlu0 %1115
  %1117 = vrot.lane.b32.xlu0 %v1086, 126
  %v1118 = vpop.permute.xlu0 %1117
  %v1127 = vmul.f32 %v1087, %v1104
  %v1128 = vmul.f32 %v1088, %v1106
  %v1129 = vmul.f32 %v1089, %v1108
  %v1130 = vmul.f32 %v1090, %v1110
  %v1131 = vmul.f32 %v1091, %v1112
  %v1132 = vmul.f32 %v1092, %v1114
  %v1133 = vmul.f32 %v1093, %v1116
  %v1134 = vmul.f32 %v1094, %v1118
  %v1135 = vpack.c.bf16 %v353, %v352
  %v1136 = vpack.c.bf16 %v355, %v354
  %v1137 = vpack.c.bf16 %v357, %v356
  %v1138 = vpack.c.bf16 %v359, %v358
  %v1139 = vld [vmem:[%s13] sm:$0xf]
  %v1140 = vld [vmem:[%s13 + $0x4] sm:$0xf]
  %v1141 = vld [vmem:[%s13 + $0x8] sm:$0xf]
  %v1142 = vld [vmem:[%s13 + $0xc] sm:$0xf]
  %v1143 = vpack.c.bf16 %v1128, %v1127
  %v1144 = vpack.c.bf16 %v1130, %v1129
  %v1145 = vpack.c.bf16 %v1132, %v1131
  %v1146 = vpack.c.bf16 %v1134, %v1133
  %v1147 = vld [vmem:[%s14] sm:$0x1]
  %vm1148 = vcmask 15360
  %v1150 = vsel %vm1148, %v1143, 0
  %v1153 = vsel %vm1148, %v1144, 0
  %v1156 = vsel %vm1148, %v1145, 0
  %v1159 = vsel %vm1148, %v1146, 0
  %vm1161 = vcmask 1040384
  %v1163 = vsel %vm1161, %v1147, 0
  %1165 = vmatprep.subr.bf16.mxu0 0
  %1166 = vmatpush1.bf16.msra.mxu0 0
  %1167 = vmatprep.subr.bf16.mxu0 0
  %1168 = vmatpush1.bf16.msra.mxu0 0
  %1169 = vmatprep.subr.bf16.mxu0 0
  %1170 = vmatpush1.bf16.msra.mxu0 0
  %1171 = vmatprep.subr.bf16.mxu0 0
  %1172 = vmatpush1.bf16.msra.mxu0 0
  %1173 = vmatprep.subr.bf16.mxu0 0
  %1174 = vmatpush1.bf16.msra.mxu0 0
  %1175 = vmatprep.subr.bf16.mxu0 0
  %1176 = vmatpush1.bf16.msra.mxu0 0
  %1177 = vmatprep.subr.bf16.mxu0 0
  %1178 = vmatpush1.bf16.msra.mxu0 0
  %1179 = vmatprep.subr.bf16.mxu0 0
  %1180 = vmatpush1.bf16.msra.mxu0 %v1163
  %1181 = vmatprep.subr.bf16.mxu0 0
  %1182 = vmatpush2.bf16.msra.mxu0 0
  %1183 = vmatprep.subr.bf16.mxu0 0
  %1184 = vmatpush2.bf16.msra.mxu0 0
  %1185 = vmatprep.subr.bf16.mxu0 0
  %1186 = vmatpush2.bf16.msra.mxu0 0
  %1187 = vmatprep.subr.bf16.mxu0 0
  %1188 = vmatpush2.bf16.msra.mxu0 0
  %1189 = vmatprep.subr.bf16.mxu0 0
  %1190 = vmatpush2.bf16.msra.mxu0 0
  %1191 = vmatprep.subr.bf16.mxu0 0
  %1192 = vmatpush2.bf16.msra.mxu0 0
  %1193 = vmatprep.subr.bf16.mxu0 0
  %1194 = vmatpush2.bf16.msra.mxu0 0
  %1195 = vmatprep.subr.bf16.mxu0 0
  %1196 = vmatpush2.bf16.msra.mxu0 0
  %1197 = vmatprep.mubr.bf16.mxu0 0
  %1198 = vmatmul.mubr.bf16.gmra.mxu0 %v1150
  %v1199 = vpop.f32.mrf.mxu0
  %v1200 = vadd.f32 0.0, %v1199
  %v1201 = vpop.f32.mrf.mxu0
  %v1202 = vpop.f32.mrf.mxu0
  %v1203 = vadd.f32 0.0, %v1202
  %v1204 = vpop.f32.mrf.mxu0
  %1205 = vmatprep.mubr.bf16.mxu0 0
  %1206 = vmatmul.mubr.bf16.gmra.mxu0 %v1153
  %v1207 = vpop.f32.mrf.mxu0
  %v1208 = vadd.f32 0.0, %v1207
  %v1209 = vpop.f32.mrf.mxu0
  %v1210 = vpop.f32.mrf.mxu0
  %v1211 = vadd.f32 0.0, %v1210
  %v1212 = vpop.f32.mrf.mxu0
  %1213 = vmatprep.mubr.bf16.mxu0 0
  %1214 = vmatmul.mubr.bf16.gmra.mxu0 %v1156
  %v1215 = vpop.f32.mrf.mxu0
  %v1216 = vadd.f32 0.0, %v1215
  %v1217 = vpop.f32.mrf.mxu0
  %v1218 = vpop.f32.mrf.mxu0
  %v1219 = vadd.f32 0.0, %v1218
  %v1220 = vpop.f32.mrf.mxu0
  %1221 = vmatprep.mubr.bf16.mxu0 0
  %1222 = vmatmul.mubr.bf16.gmra.mxu0 %v1159
  %v1223 = vpop.f32.mrf.mxu0
  %v1224 = vadd.f32 0.0, %v1223
  %v1225 = vpop.f32.mrf.mxu0
  %v1226 = vpop.f32.mrf.mxu0
  %v1227 = vadd.f32 0.0, %v1226
  %v1228 = vpop.f32.mrf.mxu0
  %1229 = vdwg.mxu0
  %v1234 = vunpack.c.l.b16 %v1139
  %v1235 = vunpack.c.l.b16 %v1140
  %v1236 = vunpack.c.l.b16 %v1141
  %v1237 = vunpack.c.l.b16 %v1142
  %v1238 = vpack.c.b16 %v1235, %v1234
  %v1239 = vpack.c.b16 %v1237, %v1236
  %v1243 = vsel %vm122, %v1135, 0
  %v1246 = vsel %vm122, %v1136, 0
  %v1249 = vsel %vm122, %v1137, 0
  %v1252 = vsel %vm122, %v1138, 0
  %1254 = vmatprep.subr.bf16.mxu0 0
  %1255 = vmatpush1.bf16.msra.mxu0 0
  %1256 = vmatprep.subr.bf16.mxu0 0
  %1257 = vmatpush1.bf16.msra.mxu0 0
  %1258 = vmatprep.subr.bf16.mxu0 0
  %1259 = vmatpush1.bf16.msra.mxu0 0
  %1260 = vmatprep.subr.bf16.mxu0 0
  %1261 = vmatpush1.bf16.msra.mxu0 0
  %1262 = vmatprep.subr.bf16.mxu0 0
  %1263 = vmatpush1.bf16.msra.mxu0 0
  %1264 = vmatprep.subr.bf16.mxu0 0
  %1265 = vmatpush1.bf16.msra.mxu0 0
  %1266 = vmatprep.subr.bf16.mxu0 0
  %1267 = vmatpush1.bf16.msra.mxu0 %v1239
  %1268 = vmatprep.subr.bf16.mxu0 0
  %1269 = vmatpush1.bf16.msra.mxu0 %v1238
  %1270 = vmatprep.subr.bf16.mxu0 0
  %1271 = vmatpush2.bf16.msra.mxu0 0
  %1272 = vmatprep.subr.bf16.mxu0 0
  %1273 = vmatpush2.bf16.msra.mxu0 0
  %1274 = vmatprep.subr.bf16.mxu0 0
  %1275 = vmatpush2.bf16.msra.mxu0 0
  %1276 = vmatprep.subr.bf16.mxu0 0
  %1277 = vmatpush2.bf16.msra.mxu0 0
  %1278 = vmatprep.subr.bf16.mxu0 0
  %1279 = vmatpush2.bf16.msra.mxu0 0
  %1280 = vmatprep.subr.bf16.mxu0 0
  %1281 = vmatpush2.bf16.msra.mxu0 0
  %1282 = vmatprep.subr.bf16.mxu0 0
  %1283 = vmatpush2.bf16.msra.mxu0 0
  %1284 = vmatprep.subr.bf16.mxu0 0
  %1285 = vmatpush2.bf16.msra.mxu0 0
  %1286 = vmatprep.mubr.bf16.mxu0 0
  %1287 = vmatmul.mubr.bf16.gmra.mxu0 %v1243
  %v1288 = vpop.f32.mrf.mxu0
  %v1289 = vadd.f32 %v1200, %v1288
  %v1290 = vpop.f32.mrf.mxu0
  %v1291 = vpop.f32.mrf.mxu0
  %v1292 = vadd.f32 %v1203, %v1291
  %v1293 = vpop.f32.mrf.mxu0
  %1294 = vmatprep.mubr.bf16.mxu0 0
  %1295 = vmatmul.mubr.bf16.gmra.mxu0 %v1246
  %v1296 = vpop.f32.mrf.mxu0
  %v1297 = vadd.f32 %v1208, %v1296
  %v1298 = vpop.f32.mrf.mxu0
  %v1299 = vpop.f32.mrf.mxu0
  %v1300 = vadd.f32 %v1211, %v1299
  %v1301 = vpop.f32.mrf.mxu0
  %1302 = vmatprep.mubr.bf16.mxu0 0
  %1303 = vmatmul.mubr.bf16.gmra.mxu0 %v1249
  %v1304 = vpop.f32.mrf.mxu0
  %v1305 = vadd.f32 %v1216, %v1304
  %v1306 = vpop.f32.mrf.mxu0
  %v1307 = vpop.f32.mrf.mxu0
  %v1308 = vadd.f32 %v1219, %v1307
  %v1309 = vpop.f32.mrf.mxu0
  %1310 = vmatprep.mubr.bf16.mxu0 0
  %1311 = vmatmul.mubr.bf16.gmra.mxu0 %v1252
  %v1312 = vpop.f32.mrf.mxu0
  %v1313 = vadd.f32 %v1224, %v1312
  %v1314 = vpop.f32.mrf.mxu0
  %v1315 = vpop.f32.mrf.mxu0
  %v1316 = vadd.f32 %v1227, %v1315
  %v1317 = vpop.f32.mrf.mxu0
  %1318 = vdwg.mxu0
  %v1319 = vld [vmem:[%s15] sm:$0x1]
  %v1321 = vlaneseq
  %v1322 = vshrl.u32 %v1321, 7
  %v1323 = vsub.s32 0, %v1322
  %v1324 = vrot.slane %v1319, %v1323
  %v1326 = vadd.f32 %v1289, %v1324
  %v1327 = vadd.f32 %v1292, %v1324
  %v1328 = vadd.f32 %v1297, %v1324
  %v1329 = vadd.f32 %v1300, %v1324
  %v1330 = vadd.f32 %v1305, %v1324
  %v1331 = vadd.f32 %v1308, %v1324
  %v1332 = vadd.f32 %v1313, %v1324
  %v1333 = vadd.f32 %v1316, %v1324
  %1334 = vst [vmem:[%s16] sm:$0xff] %v1326
  %1335 = vst [vmem:[%s16 + $0x8] sm:$0xff] %v1327
  %1336 = vst [vmem:[%s16 + $0x10] sm:$0xff] %v1328
  %1337 = vst [vmem:[%s16 + $0x18] sm:$0xff] %v1329
  %1338 = vst [vmem:[%s16 + $0x20] sm:$0xff] %v1330
  %1339 = vst [vmem:[%s16 + $0x28] sm:$0xff] %v1331
  %1340 = vst [vmem:[%s16 + $0x30] sm:$0xff] %v1332
  %1341 = vst [vmem:[%s16 + $0x38] sm:$0xff] %v1333
  // Predicated region
  $region66: #{temporal_emb_forward.1} parent=0 // pred_check
    _
  $region67: #{temporal_emb_forward.1} parent=0 // pred_check_branch
    %1343 = sbr.rel (0) target = $region69
  $region68: #{temporal_emb_forward.1} parent=0 // pred_region
    _
  $region69: #{temporal_emb_forward.1} parent=0 // pred_fallthru
    _
  // Predicated region
  $region70: #{temporal_emb_forward.1} parent=0 // pred_check
    _
  $region71: #{temporal_emb_forward.1} parent=0 // pred_check_branch
    %1345 = sbr.rel (0) target = $region73
  $region72: #{temporal_emb_forward.1} parent=0 // pred_region
    _
  $region73: #{temporal_emb_forward.1} parent=0 // pred_fallthru
    _

</llo_original>
